<compile_context>
chip_gen: v7x
topology: tpu7x:2x2x1
jax: 0.10.0
libtpu: 0.0.40
codegen_flags: <defaults>
</compile_context>

<pallas_src>
import math
import functools

import jax
import jax.numpy as jnp
from jax import lax
from jax.experimental import pallas as pl
from jax.experimental.pallas import tpu as pltpu


def _mine_kernel(zc_ref, zd_ref, zds_ref,                           # activations (tiled)
                 ln_g_ref, ln_b_ref, w1_ref, b1_ref, w2_ref, b2_ref,  # params
                 sum0_out_ref, max_out_ref, sexp_out_ref,            # per-core partials
                 x_ref, sum0_ref, max_ref, sexp_ref,                 # scratch
                 *, n_total, tile_n, tiles_per_core, zc_dim, use_bf16_matmul):
    c = pl.program_id(0)          # TensorCore shard ("parallel")
    i = pl.program_id(1)          # N-chunk within the shard ("arbitrary")

    # ---- init running reductions at the start of each core's sweep ---------
    @pl.when(i == 0)
    def _init():
        sum0_ref[...] = jnp.zeros((1, 1), jnp.float32)          # sum(T0)
        max_ref[...] = jnp.full((1, 1), -jnp.inf, jnp.float32)  # running max(T1)
        sexp_ref[...] = jnp.zeros((1, 1), jnp.float32)          # running sum exp

    # ---- row-validity mask (tail padding / clamped overflow tiles) ---------
    tile_idx = c * tiles_per_core + i          # UNclamped logical tile index
    base = tile_idx * tile_n
    rows = base + lax.broadcasted_iota(jnp.int32, (tile_n, 1), 0)
    valid = rows < n_total

    # ---- assemble stacked (joint ++ shuffled-marginal) operand in place ----
    x_ref[:tile_n, :zc_dim] = zc_ref[...]
    x_ref[tile_n:, :zc_dim] = zc_ref[...]
    x_ref[:tile_n, zc_dim:] = zd_ref[...]
    x_ref[tile_n:, zc_dim:] = zds_ref[...]
    x = x_ref[...]                                              # (2*tn, D)

    # LayerNorm over the feature axis (torch eps / biased variance).
    mu = jnp.mean(x, axis=-1, keepdims=True)
    xc = x - mu
    var = jnp.mean(xc * xc, axis=-1, keepdims=True)
    xn = xc * lax.rsqrt(var + 1e-5)
    xn = xn * ln_g_ref[...] + ln_b_ref[...]

    # Hidden Linear + ReLU (dropout_rate=0 -> identity).  W1 is pre-cast to
    # bf16 in the wrapper when use_bf16_matmul; accumulation stays f32.
    if use_bf16_matmul:
        xn = xn.astype(jnp.bfloat16)
    h = jnp.dot(xn, w1_ref[...], preferred_element_type=jnp.float32) + b1_ref[...]
    h = jnp.maximum(h, 0.0)

    # Output Linear (H -> 1) as VPU broadcast-multiply + lane reduce.
    t = jnp.sum(h * w2_ref[...], axis=-1, keepdims=True) + b2_ref[...]  # (2*tn, 1)
    t0 = t[:tile_n, :]
    t1 = t[tile_n:, :]

    # ---- online reductions (masked at (tn,1) granularity only) -------------
    sum0_ref[...] += jnp.sum(jnp.where(valid, t0, 0.0), keepdims=True)

    m_prev = max_ref[...]                                              # (1,1)
    m_tile = jnp.max(jnp.where(valid, t1, -jnp.inf), keepdims=True)    # (1,1)
    m_new = jnp.maximum(m_prev, m_tile)
    # Guard the -inf - -inf = NaN case (an entirely padded tile on a core).
    alpha = jnp.where(m_new == -jnp.inf, 0.0, jnp.exp(m_prev - m_new))
    sexp_ref[...] = (sexp_ref[...] * alpha
                     + jnp.sum(jnp.where(valid, jnp.exp(t1 - m_new), 0.0),
                               keepdims=True))
    max_ref[...] = m_new

    # ---- emit this core's partial reductions on its last tile --------------
    @pl.when(i == tiles_per_core - 1)
    def _finalize():
        sum0_out_ref[...] = jnp.broadcast_to(sum0_ref[...], sum0_out_ref.shape)
        max_out_ref[...] = jnp.broadcast_to(max_ref[...], max_out_ref.shape)
        sexp_out_ref[...] = jnp.broadcast_to(sexp_ref[...], sexp_out_ref.shape)


@functools.partial(jax.jit,
                   static_argnames=("tile_n", "num_cores", "use_bf16_matmul"))
def mine_forward(z_c, z_d, ln_g, ln_b, w1, b1, w2, b2, shuffle_idx,
                 tile_n=4096, num_cores=2, use_bf16_matmul=True):
    """Fused MINE forward; returns (mi, 0.0, 0.0)."""
    n, zc_dim = z_c.shape
    zd_dim = z_d.shape[1]
    d = zc_dim + zd_dim
    hdim = w1.shape[1]

    # Host-side gather of the shuffled marginal batch (one streamed HBM pass);
    # it is then streamed tile-by-tile like z_c / z_d -> no full z_d in VMEM.
    z_d_shuffle = jnp.take(z_d, shuffle_idx, axis=0)

    # Row-tile size: multiple of 8 sublanes, no bigger than needed.
    tn = max(8, (min(tile_n, n) // 8) * 8)
    tiles_total = pl.cdiv(n, tn)
    nc = max(1, min(num_cores, tiles_total))          # TensorCore shards
    tpc = pl.cdiv(tiles_total, nc)                    # tiles per shard

    if use_bf16_matmul:
        w1 = w1.astype(jnp.bfloat16)                  # cast once, outside kernel

    def row_map(c, i):
        # Clamp overflow tiles of the padded core; their rows are masked.
        return (jnp.minimum(c * tpc + i, tiles_total - 1), 0)

    kernel = functools.partial(_mine_kernel, n_total=n, tile_n=tn,
                               tiles_per_core=tpc, zc_dim=zc_dim,
                               use_bf16_matmul=use_bf16_matmul)

    grid_spec = pltpu.PrefetchScalarGridSpec(
        num_scalar_prefetch=0,
        grid=(nc, tpc),
        in_specs=[
            pl.BlockSpec((tn, zc_dim), row_map),            # z_c tile
            pl.BlockSpec((tn, zd_dim), row_map),            # z_d tile (joint)
            pl.BlockSpec((tn, zd_dim), row_map),            # z_d_shuffle tile
            pl.BlockSpec((1, d), lambda c, i: (0, 0)),      # LN gamma
            pl.BlockSpec((1, d), lambda c, i: (0, 0)),      # LN beta
            pl.BlockSpec((d, hdim), lambda c, i: (0, 0)),   # W1 (D, H)
            pl.BlockSpec((1, hdim), lambda c, i: (0, 0)),   # b1
            pl.BlockSpec((1, hdim), lambda c, i: (0, 0)),   # W2 stored (1, H)
            pl.BlockSpec((1, 1), lambda c, i: (0, 0)),      # b2
        ],
        out_specs=[
            pl.BlockSpec((8, 128), lambda c, i: (c, 0)),    # per-core sum(T0)
            pl.BlockSpec((8, 128), lambda c, i: (c, 0)),    # per-core max(T1)
            pl.BlockSpec((8, 128), lambda c, i: (c, 0)),    # per-core sum exp
        ],
        scratch_shapes=[
            pltpu.VMEM((2 * tn, d), jnp.float32),   # stacked joint+marginal tile
            pltpu.VMEM((1, 1), jnp.float32),        # sum(T0)
            pltpu.VMEM((1, 1), jnp.float32),        # running max(T1)
            pltpu.VMEM((1, 1), jnp.float32),        # running sum exp(T1 - m)
        ],
    )

    out_shapes = (
        jax.ShapeDtypeStruct((nc * 8, 128), jnp.float32),
        jax.ShapeDtypeStruct((nc * 8, 128), jnp.float32),
        jax.ShapeDtypeStruct((nc * 8, 128), jnp.float32),
    )

    flops = 2 * (2 * n) * d * hdim + 6 * (2 * n) * hdim + 10 * (2 * n) * d
    bytes_accessed = 4 * (n * zc_dim + 2 * n * zd_dim) + 4 * (d * hdim + 2 * d
                                                              + 2 * hdim + 1)
    transcendentals = 3 * n   # rsqrt per stacked row + exp for logsumexp

    sum0_p, max_p, sexp_p = pl.pallas_call(
        kernel,
        out_shape=out_shapes,
        grid_spec=grid_spec,
        compiler_params=pltpu.CompilerParams(
            dimension_semantics=("parallel", "arbitrary"),
            vmem_limit_bytes=32 * 1024 * 1024,        # safe on v5e/v6e/v7x
        ),
        cost_estimate=pl.CostEstimate(
            flops=int(flops),
            transcendentals=int(transcendentals),
            bytes_accessed=int(bytes_accessed)),
    )(z_c, z_d, z_d_shuffle, ln_g, ln_b, w1, b1, w2, b2)

    # Tiny JAX epilogue: merge per-core partial (sum, max, sumexp) reductions.
    s0 = sum0_p[0::8, 0]          # (nc,)
    mx = max_p[0::8, 0]
    se = sexp_p[0::8, 0]
    m_glob = jnp.max(mx)
    sexp_glob = jnp.sum(jnp.where(mx == -jnp.inf, 0.0, se * jnp.exp(mx - m_glob)))
    lse = m_glob + jnp.log(sexp_glob)
    mi = jnp.sum(s0) / n - (lse - math.log(n))
    return mi, 0.0, 0.0


def _reference_forward(z_c, z_d, ln_g, ln_b, w1, b1, w2, b2, shuffle_idx):
    """Pure-JAX reference for correctness checking (w2 stored as (1, H))."""
    def ff(x):
        mu = jnp.mean(x, axis=-1, keepdims=True)
        var = jnp.mean((x - mu) ** 2, axis=-1, keepdims=True)
        xn = (x - mu) / jnp.sqrt(var + 1e-5) * ln_g + ln_b
        h = jnp.maximum(xn @ w1 + b1, 0.0)
        return jnp.sum(h * w2, axis=-1, keepdims=True) + b2

    n = z_d.shape[0]
    t0 = ff(jnp.concatenate([z_c, z_d], axis=-1))
    t1 = ff(jnp.concatenate([z_c, z_d[shuffle_idx]], axis=-1))
    lse = jax.scipy.special.logsumexp(t1.squeeze(), axis=0)
    return jnp.mean(t0) - (lse - math.log(n))


if __name__ == "__main__":
    # Small shapes consistent with the module: N=300, zc_dim=16, zd_dim=16.
    # tile_n=128 / num_cores=2 exercises multi-tile accumulation, the partial
    # last tile, the clamped overflow tile and the two-core partial merge.
    N, ZC, ZD = 300, 16, 16
    D, H = ZC + ZD, ZC

    key = jax.random.PRNGKey(0)
    k_zc, k_zd, k_idx, k_w1, k_b1, k_w2, k_b2 = jax.random.split(key, 7)

    z_c = jax.random.normal(k_zc, (N, ZC), dtype=jnp.float32)
    z_d = jax.random.normal(k_zd, (N, ZD), dtype=jnp.float32)

    # torch.randint samples WITH replacement; mirror that deterministically.
    shuffle_idx = jax.random.randint(k_idx, (N,), 0, N, dtype=jnp.int32)

    # Deterministic parameter init (shapes from FF.__init__):
    #   LayerNorm(D): gamma=1, beta=0
    #   Linear(D, H): W1 (D, H) [= torch W.T], b1 (H,)
    #   Linear(H, 1): W2 stored as (1, H) for the VPU lane-reduce, b2 (1, 1)
    ln_g = jnp.ones((1, D), jnp.float32)
    ln_b = jnp.zeros((1, D), jnp.float32)
    w1 = jax.random.normal(k_w1, (D, H), jnp.float32) / math.sqrt(D)
    b1 = jax.random.normal(k_b1, (1, H), jnp.float32) * 0.01
    w2 = jax.random.normal(k_w2, (1, H), jnp.float32) / math.sqrt(H)
    b2 = jax.random.normal(k_b2, (1, 1), jnp.float32) * 0.01

    mi_ref = _reference_forward(z_c, z_d, ln_g, ln_b, w1, b1, w2, b2, shuffle_idx)

    # Exact f32 path (tight check against the f32 reference).
    mi_f32, _, _ = mine_forward(z_c, z_d, ln_g, ln_b, w1, b1, w2, b2, shuffle_idx,
                                tile_n=128, num_cores=2, use_bf16_matmul=False)
    mi_f32 = jax.block_until_ready(mi_f32)
    assert abs(float(mi_f32) - float(mi_ref)) < 1e-4, (float(mi_f32), float(mi_ref))

    # Default fast path: bf16 MXU operands with f32 accumulation.
    mi_bf16, _, _ = mine_forward(z_c, z_d, ln_g, ln_b, w1, b1, w2, b2, shuffle_idx,
                                 tile_n=128, num_cores=2)
    mi_bf16 = jax.block_until_ready(mi_bf16)
    assert abs(float(mi_bf16) - float(mi_ref)) < 3e-2, (float(mi_bf16), float(mi_ref))

    print("KERNEL_OK")
</pallas_src>

<mosaic_0001>
module attributes {stable_mosaic.version = 11 : i64} {
  func.func @_mine_kernel(%arg0: i32, %arg1: i32, %arg2: memref<128x16xf32, #tpu.memory_space<vmem>>, %arg3: memref<128x16xf32, #tpu.memory_space<vmem>>, %arg4: memref<128x16xf32, #tpu.memory_space<vmem>>, %arg5: memref<1x32xf32, #tpu.memory_space<vmem>>, %arg6: memref<1x32xf32, #tpu.memory_space<vmem>>, %arg7: memref<32x16xf32, #tpu.memory_space<vmem>>, %arg8: memref<1x16xf32, #tpu.memory_space<vmem>>, %arg9: memref<1x16xf32, #tpu.memory_space<vmem>>, %arg10: memref<1x1xf32, #tpu.memory_space<vmem>>, %arg11: memref<8x128xf32, #tpu.memory_space<vmem>>, %arg12: memref<8x128xf32, #tpu.memory_space<vmem>>, %arg13: memref<8x128xf32, #tpu.memory_space<vmem>>, %arg14: memref<256x32xf32, #tpu.memory_space<vmem>>, %arg15: memref<1x1xf32, #tpu.memory_space<vmem>>, %arg16: memref<1x1xf32, #tpu.memory_space<vmem>>, %arg17: memref<1x1xf32, #tpu.memory_space<vmem>>) attributes {dimension_semantics = [#tpu.dimension_semantics<parallel>, #tpu.dimension_semantics<arbitrary>], iteration_bounds = array<i64: 2, 2>, scalar_prefetch = 0 : i64, scratch_operands = 4 : i64, tpu.core_type = #tpu.core_type<tc>, window_params = [{transform_indices = @transform_0, window_bounds = array<i64: 128, 16>}, {transform_indices = @transform_1, window_bounds = array<i64: 128, 16>}, {transform_indices = @transform_2, window_bounds = array<i64: 128, 16>}, {pipeline_mode = #tpu.pipeline_mode<synchronous>, transform_indices = @transform_3, window_bounds = array<i64: 1, 32>}, {pipeline_mode = #tpu.pipeline_mode<synchronous>, transform_indices = @transform_4, window_bounds = array<i64: 1, 32>}, {pipeline_mode = #tpu.pipeline_mode<synchronous>, transform_indices = @transform_5, window_bounds = array<i64: 32, 16>}, {pipeline_mode = #tpu.pipeline_mode<synchronous>, transform_indices = @transform_6, window_bounds = array<i64: 1, 16>}, {pipeline_mode = #tpu.pipeline_mode<synchronous>, transform_indices = @transform_7, window_bounds = array<i64: 1, 16>}, {pipeline_mode = #tpu.pipeline_mode<synchronous>, transform_indices = @transform_8, window_bounds = array<i64: 1, 1>}, {transform_indices = @transform_9, window_bounds = array<i64: 8, 128>}, {transform_indices = @transform_10, window_bounds = array<i64: 8, 128>}, {transform_indices = @transform_11, window_bounds = array<i64: 8, 128>}]} {
    %c0_i32 = arith.constant 0 : i32
    %0 = arith.cmpi eq, %arg1, %c0_i32 : i32
    %1 = arith.extui %0 : i1 to i32
    %c0_i32_0 = arith.constant 0 : i32
    %2 = arith.cmpi ne, %1, %c0_i32_0 : i32
    scf.if %2 {
      %cst_56 = arith.constant 0.000000e+00 : f32
      %102 = vector.broadcast %cst_56 : f32 to vector<1x1xf32>
      %c0_57 = arith.constant 0 : index
      %c0_58 = arith.constant 0 : index
      %103 = vector.load %arg15[%c0_57, %c0_58] : memref<1x1xf32, #tpu.memory_space<vmem>>, vector<1x1xf32>
      tpu.vector_store %arg15[%c0_57, %c0_58], %102 {strides = array<i32>} : memref<1x1xf32, #tpu.memory_space<vmem>>, vector<1x1xf32>,
      %cst_59 = arith.constant 0xFF800000 : f32
      %104 = vector.broadcast %cst_59 : f32 to vector<1x1xf32>
      %c0_60 = arith.constant 0 : index
      %c0_61 = arith.constant 0 : index
      %105 = vector.load %arg16[%c0_60, %c0_61] : memref<1x1xf32, #tpu.memory_space<vmem>>, vector<1x1xf32>
      tpu.vector_store %arg16[%c0_60, %c0_61], %104 {strides = array<i32>} : memref<1x1xf32, #tpu.memory_space<vmem>>, vector<1x1xf32>,
      %cst_62 = arith.constant 0.000000e+00 : f32
      %106 = vector.broadcast %cst_62 : f32 to vector<1x1xf32>
      %c0_63 = arith.constant 0 : index
      %c0_64 = arith.constant 0 : index
      %107 = vector.load %arg17[%c0_63, %c0_64] : memref<1x1xf32, #tpu.memory_space<vmem>>, vector<1x1xf32>
      tpu.vector_store %arg17[%c0_63, %c0_64], %106 {strides = array<i32>} : memref<1x1xf32, #tpu.memory_space<vmem>>, vector<1x1xf32>,
    } else {
    }
    %c2_i32 = arith.constant 2 : i32
    %3 = arith.muli %arg0, %c2_i32 : i32
    %4 = arith.addi %3, %arg1 : i32
    %c128_i32 = arith.constant 128 : i32
    %5 = arith.muli %4, %c128_i32 : i32
    %6 = tpu.iota {dimensions = array<i32: 0>} : vector<128x1xi32>
    %7 = vector.broadcast %5 : i32 to vector<128x1xi32>
    %8 = arith.addi %7, %6 : vector<128x1xi32>
    %c300_i32 = arith.constant 300 : i32
    %9 = vector.broadcast %c300_i32 : i32 to vector<128x1xi32>
    %10 = arith.cmpi slt, %8, %9 : vector<128x1xi32>
    %c0 = arith.constant 0 : index
    %c0_1 = arith.constant 0 : index
    %11 = vector.load %arg2[%c0, %c0_1] : memref<128x16xf32, #tpu.memory_space<vmem>>, vector<128x16xf32>
    %c0_2 = arith.constant 0 : index
    %c0_3 = arith.constant 0 : index
    %12 = vector.load %arg14[%c0_2, %c0_3] : memref<256x32xf32, #tpu.memory_space<vmem>>, vector<128x16xf32>
    tpu.vector_store %arg14[%c0_2, %c0_3], %11 {strides = array<i32>} : memref<256x32xf32, #tpu.memory_space<vmem>>, vector<128x16xf32>,
    %c0_4 = arith.constant 0 : index
    %c0_5 = arith.constant 0 : index
    %13 = vector.load %arg2[%c0_4, %c0_5] : memref<128x16xf32, #tpu.memory_space<vmem>>, vector<128x16xf32>
    %c128 = arith.constant 128 : index
    %c0_6 = arith.constant 0 : index
    %14 = vector.load %arg14[%c128, %c0_6] : memref<256x32xf32, #tpu.memory_space<vmem>>, vector<128x16xf32>
    tpu.vector_store %arg14[%c128, %c0_6], %13 {strides = array<i32>} : memref<256x32xf32, #tpu.memory_space<vmem>>, vector<128x16xf32>,
    %c0_7 = arith.constant 0 : index
    %c0_8 = arith.constant 0 : index
    %15 = vector.load %arg3[%c0_7, %c0_8] : memref<128x16xf32, #tpu.memory_space<vmem>>, vector<128x16xf32>
    %c0_9 = arith.constant 0 : index
    %c16 = arith.constant 16 : index
    %16 = vector.load %arg14[%c0_9, %c16] : memref<256x32xf32, #tpu.memory_space<vmem>>, vector<128x16xf32>
    tpu.vector_store %arg14[%c0_9, %c16], %15 {strides = array<i32>} : memref<256x32xf32, #tpu.memory_space<vmem>>, vector<128x16xf32>,
    %c0_10 = arith.constant 0 : index
    %c0_11 = arith.constant 0 : index
    %17 = vector.load %arg4[%c0_10, %c0_11] : memref<128x16xf32, #tpu.memory_space<vmem>>, vector<128x16xf32>
    %c128_12 = arith.constant 128 : index
    %c16_13 = arith.constant 16 : index
    %18 = vector.load %arg14[%c128_12, %c16_13] : memref<256x32xf32, #tpu.memory_space<vmem>>, vector<128x16xf32>
    tpu.vector_store %arg14[%c128_12, %c16_13], %17 {strides = array<i32>} : memref<256x32xf32, #tpu.memory_space<vmem>>, vector<128x16xf32>,
    %c0_14 = arith.constant 0 : index
    %c0_15 = arith.constant 0 : index
    %19 = vector.load %arg14[%c0_14, %c0_15] : memref<256x32xf32, #tpu.memory_space<vmem>>, vector<256x32xf32>
    %cst = arith.constant dense<0.000000e+00> : vector<256xf32>
    %20 = vector.multi_reduction <add>, %19, %cst [1] : vector<256x32xf32> to vector<256xf32>
    %21 = vector.shape_cast %20 : vector<256xf32> to vector<256x1xf32>
    %cst_16 = arith.constant 3.200000e+01 : f32
    %22 = vector.broadcast %cst_16 : f32 to vector<256x1xf32>
    %23 = arith.divf %21, %22 : vector<256x1xf32>
    %24 = vector.broadcast %23 : vector<256x1xf32> to vector<256x32xf32>
    %25 = arith.subf %19, %24 : vector<256x32xf32>
    %26 = arith.mulf %25, %25 : vector<256x32xf32>
    %cst_17 = arith.constant dense<0.000000e+00> : vector<256xf32>
    %27 = vector.multi_reduction <add>, %26, %cst_17 [1] : vector<256x32xf32> to vector<256xf32>
    %28 = vector.shape_cast %27 : vector<256xf32> to vector<256x1xf32>
    %cst_18 = arith.constant 3.200000e+01 : f32
    %29 = vector.broadcast %cst_18 : f32 to vector<256x1xf32>
    %30 = arith.divf %28, %29 : vector<256x1xf32>
    %cst_19 = arith.constant 9.99999974E-6 : f32
    %31 = vector.broadcast %cst_19 : f32 to vector<256x1xf32>
    %32 = arith.addf %30, %31 : vector<256x1xf32>
    %33 = math.rsqrt %32 : vector<256x1xf32>
    %34 = vector.broadcast %33 : vector<256x1xf32> to vector<256x32xf32>
    %35 = arith.mulf %25, %34 : vector<256x32xf32>
    %c0_20 = arith.constant 0 : index
    %c0_21 = arith.constant 0 : index
    %36 = vector.load %arg5[%c0_20, %c0_21] : memref<1x32xf32, #tpu.memory_space<vmem>>, vector<1x32xf32>
    %37 = vector.broadcast %36 : vector<1x32xf32> to vector<256x32xf32>
    %38 = arith.mulf %35, %37 : vector<256x32xf32>
    %c0_22 = arith.constant 0 : index
    %c0_23 = arith.constant 0 : index
    %39 = vector.load %arg6[%c0_22, %c0_23] : memref<1x32xf32, #tpu.memory_space<vmem>>, vector<1x32xf32>
    %40 = vector.broadcast %39 : vector<1x32xf32> to vector<256x32xf32>
    %41 = arith.addf %38, %40 : vector<256x32xf32>
    %c0_24 = arith.constant 0 : index
    %c0_25 = arith.constant 0 : index
    %42 = vector.load %arg7[%c0_24, %c0_25] : memref<32x16xf32, #tpu.memory_space<vmem>>, vector<32x16xf32>
    %cst_26 = arith.constant dense<0.000000e+00> : vector<256x16xf32>
    %43 = tpu.matmul %41, %42, %cst_26 {dimension_numbers = #tpu.dot_dimension_numbers<[1], [0], [0], [1], [0, 0, 1, 1], [], []>} : vector<256x32xf32>, vector<32x16xf32>, vector<256x16xf32> -> vector<256x16xf32>
    %c0_27 = arith.constant 0 : index
    %c0_28 = arith.constant 0 : index
    %44 = vector.load %arg8[%c0_27, %c0_28] : memref<1x16xf32, #tpu.memory_space<vmem>>, vector<1x16xf32>
    %45 = vector.broadcast %44 : vector<1x16xf32> to vector<256x16xf32>
    %46 = arith.addf %43, %45 : vector<256x16xf32>
    %cst_29 = arith.constant 0.000000e+00 : f32
    %47 = vector.broadcast %cst_29 : f32 to vector<256x16xf32>
    %48 = arith.maximumf %46, %47 : vector<256x16xf32>
    %c0_30 = arith.constant 0 : index
    %c0_31 = arith.constant 0 : index
    %49 = vector.load %arg9[%c0_30, %c0_31] : memref<1x16xf32, #tpu.memory_space<vmem>>, vector<1x16xf32>
    %50 = vector.broadcast %49 : vector<1x16xf32> to vector<256x16xf32>
    %51 = arith.mulf %48, %50 : vector<256x16xf32>
    %cst_32 = arith.constant dense<0.000000e+00> : vector<256xf32>
    %52 = vector.multi_reduction <add>, %51, %cst_32 [1] : vector<256x16xf32> to vector<256xf32>
    %53 = vector.shape_cast %52 : vector<256xf32> to vector<256x1xf32>
    %c0_33 = arith.constant 0 : index
    %c0_34 = arith.constant 0 : index
    %54 = vector.load %arg10[%c0_33, %c0_34] : memref<1x1xf32, #tpu.memory_space<vmem>>, vector<1x1xf32>
    %55 = vector.broadcast %54 : vector<1x1xf32> to vector<256x1xf32>
    %56 = arith.addf %53, %55 : vector<256x1xf32>
    %57 = vector.extract_strided_slice %56 {offsets = [0, 0], sizes = [128, 1], strides = [1, 1]} : vector<256x1xf32> to vector<128x1xf32>
    %58 = vector.extract_strided_slice %56 {offsets = [128, 0], sizes = [128, 1], strides = [1, 1]} : vector<256x1xf32> to vector<128x1xf32>
    %c0_35 = arith.constant 0 : index
    %c0_36 = arith.constant 0 : index
    %59 = vector.load %arg15[%c0_35, %c0_36] : memref<1x1xf32, #tpu.memory_space<vmem>>, vector<1x1xf32>
    %cst_37 = arith.constant 0.000000e+00 : f32
    %60 = vector.broadcast %cst_37 : f32 to vector<128x1xf32>
    %61 = arith.select %10, %57, %60 : vector<128x1xi1>, vector<128x1xf32>
    %62 = vector.shape_cast %61 : vector<128x1xf32> to vector<1x128x1xf32>
    %cst_38 = arith.constant dense<0.000000e+00> : vector<1xf32>
    %63 = vector.multi_reduction <add>, %62, %cst_38 [1, 2] : vector<1x128x1xf32> to vector<1xf32>
    %64 = vector.shape_cast %63 : vector<1xf32> to vector<1x1x1xf32>
    %65 = vector.extract %64[0, 0, 0] : f32 from vector<1x1x1xf32>
    %66 = vector.broadcast %65 : f32 to vector<1x1xf32>
    %67 = arith.addf %59, %66 : vector<1x1xf32>
    %c0_39 = arith.constant 0 : index
    %c0_40 = arith.constant 0 : index
    %68 = vector.load %arg15[%c0_39, %c0_40] : memref<1x1xf32, #tpu.memory_space<vmem>>, vector<1x1xf32>
    tpu.vector_store %arg15[%c0_39, %c0_40], %67 {strides = array<i32>} : memref<1x1xf32, #tpu.memory_space<vmem>>, vector<1x1xf32>,
    %c0_41 = arith.constant 0 : index
    %c0_42 = arith.constant 0 : index
    %69 = vector.load %arg16[%c0_41, %c0_42] : memref<1x1xf32, #tpu.memory_space<vmem>>, vector<1x1xf32>
    %cst_43 = arith.constant 0xFF800000 : f32
    %70 = vector.broadcast %cst_43 : f32 to vector<128x1xf32>
    %71 = arith.select %10, %58, %70 : vector<128x1xi1>, vector<128x1xf32>
    %72 = vector.shape_cast %71 : vector<128x1xf32> to vector<1x128x1xf32>
    %cst_44 = arith.constant dense<0xFF800000> : vector<1xf32>
    %73 = vector.multi_reduction <maximumf>, %72, %cst_44 [1, 2] : vector<1x128x1xf32> to vector<1xf32>
    %74 = vector.shape_cast %73 : vector<1xf32> to vector<1x1x1xf32>
    %75 = vector.extract %74[0, 0, 0] : f32 from vector<1x1x1xf32>
    %76 = vector.broadcast %75 : f32 to vector<1x1xf32>
    %77 = arith.maximumf %69, %76 : vector<1x1xf32>
    %cst_45 = arith.constant 0xFF800000 : f32
    %78 = vector.broadcast %cst_45 : f32 to vector<1x1xf32>
    %79 = arith.cmpf oeq, %77, %78 : vector<1x1xf32>
    %80 = arith.subf %69, %77 : vector<1x1xf32>
    %81 = math.exp %80 : vector<1x1xf32>
    %cst_46 = arith.constant 0.000000e+00 : f32
    %82 = vector.broadcast %cst_46 : f32 to vector<1x1xf32>
    %83 = arith.select %79, %82, %81 : vector<1x1xi1>, vector<1x1xf32>
    %c0_47 = arith.constant 0 : index
    %c0_48 = arith.constant 0 : index
    %84 = vector.load %arg17[%c0_47, %c0_48] : memref<1x1xf32, #tpu.memory_space<vmem>>, vector<1x1xf32>
    %85 = arith.mulf %84, %83 : vector<1x1xf32>
    %86 = vector.broadcast %77 : vector<1x1xf32> to vector<128x1xf32>
    %87 = arith.subf %58, %86 : vector<128x1xf32>
    %88 = math.exp %87 : vector<128x1xf32>
    %cst_49 = arith.constant 0.000000e+00 : f32
    %89 = vector.broadcast %cst_49 : f32 to vector<128x1xf32>
    %90 = arith.select %10, %88, %89 : vector<128x1xi1>, vector<128x1xf32>
    %91 = vector.shape_cast %90 : vector<128x1xf32> to vector<1x128x1xf32>
    %cst_50 = arith.constant dense<0.000000e+00> : vector<1xf32>
    %92 = vector.multi_reduction <add>, %91, %cst_50 [1, 2] : vector<1x128x1xf32> to vector<1xf32>
    %93 = vector.shape_cast %92 : vector<1xf32> to vector<1x1x1xf32>
    %94 = vector.extract %93[0, 0, 0] : f32 from vector<1x1x1xf32>
    %95 = vector.broadcast %94 : f32 to vector<1x1xf32>
    %96 = arith.addf %85, %95 : vector<1x1xf32>
    %c0_51 = arith.constant 0 : index
    %c0_52 = arith.constant 0 : index
    %97 = vector.load %arg17[%c0_51, %c0_52] : memref<1x1xf32, #tpu.memory_space<vmem>>, vector<1x1xf32>
    tpu.vector_store %arg17[%c0_51, %c0_52], %96 {strides = array<i32>} : memref<1x1xf32, #tpu.memory_space<vmem>>, vector<1x1xf32>,
    %c0_53 = arith.constant 0 : index
    %c0_54 = arith.constant 0 : index
    %98 = vector.load %arg16[%c0_53, %c0_54] : memref<1x1xf32, #tpu.memory_space<vmem>>, vector<1x1xf32>
    tpu.vector_store %arg16[%c0_53, %c0_54], %77 {strides = array<i32>} : memref<1x1xf32, #tpu.memory_space<vmem>>, vector<1x1xf32>,
    %c1_i32 = arith.constant 1 : i32
    %99 = arith.cmpi eq, %arg1, %c1_i32 : i32
    %100 = arith.extui %99 : i1 to i32
    %c0_i32_55 = arith.constant 0 : i32
    %101 = arith.cmpi ne, %100, %c0_i32_55 : i32
    scf.if %101 {
      %c0_56 = arith.constant 0 : index
      %c0_57 = arith.constant 0 : index
      %102 = vector.load %arg15[%c0_56, %c0_57] : memref<1x1xf32, #tpu.memory_space<vmem>>, vector<1x1xf32>
      %103 = vector.shape_cast %102 : vector<1x1xf32> to vector<1x1xf32>
      %104 = vector.broadcast %103 : vector<1x1xf32> to vector<8x128xf32>
      %c0_58 = arith.constant 0 : index
      %c0_59 = arith.constant 0 : index
      %105 = vector.load %arg11[%c0_58, %c0_59] : memref<8x128xf32, #tpu.memory_space<vmem>>, vector<8x128xf32>
      tpu.vector_store %arg11[%c0_58, %c0_59], %104 {strides = array<i32>} : memref<8x128xf32, #tpu.memory_space<vmem>>, vector<8x128xf32>,
      %c0_60 = arith.constant 0 : index
      %c0_61 = arith.constant 0 : index
      %106 = vector.load %arg16[%c0_60, %c0_61] : memref<1x1xf32, #tpu.memory_space<vmem>>, vector<1x1xf32>
      %107 = vector.shape_cast %106 : vector<1x1xf32> to vector<1x1xf32>
      %108 = vector.broadcast %107 : vector<1x1xf32> to vector<8x128xf32>
      %c0_62 = arith.constant 0 : index
      %c0_63 = arith.constant 0 : index
      %109 = vector.load %arg12[%c0_62, %c0_63] : memref<8x128xf32, #tpu.memory_space<vmem>>, vector<8x128xf32>
      tpu.vector_store %arg12[%c0_62, %c0_63], %108 {strides = array<i32>} : memref<8x128xf32, #tpu.memory_space<vmem>>, vector<8x128xf32>,
      %c0_64 = arith.constant 0 : index
      %c0_65 = arith.constant 0 : index
      %110 = vector.load %arg17[%c0_64, %c0_65] : memref<1x1xf32, #tpu.memory_space<vmem>>, vector<1x1xf32>
      %111 = vector.shape_cast %110 : vector<1x1xf32> to vector<1x1xf32>
      %112 = vector.broadcast %111 : vector<1x1xf32> to vector<8x128xf32>
      %c0_66 = arith.constant 0 : index
      %c0_67 = arith.constant 0 : index
      %113 = vector.load %arg13[%c0_66, %c0_67] : memref<8x128xf32, #tpu.memory_space<vmem>>, vector<8x128xf32>
      tpu.vector_store %arg13[%c0_66, %c0_67], %112 {strides = array<i32>} : memref<8x128xf32, #tpu.memory_space<vmem>>, vector<8x128xf32>,
    } else {
    }
    return
  }
  func.func @transform_0(%arg0: i32, %arg1: i32) -> (i32, i32) {
    %c2_i32 = arith.constant 2 : i32
    %0 = arith.muli %arg0, %c2_i32 : i32
    %1 = arith.addi %0, %arg1 : i32
    %c2_i32_0 = arith.constant 2 : i32
    %2 = arith.minsi %1, %c2_i32_0 : i32
    %c0_i32 = arith.constant 0 : i32
    %c0_i32_1 = arith.constant 0 : i32
    return %2, %c0_i32 : i32, i32
  }
  func.func @transform_1(%arg0: i32, %arg1: i32) -> (i32, i32) {
    %c2_i32 = arith.constant 2 : i32
    %0 = arith.muli %arg0, %c2_i32 : i32
    %1 = arith.addi %0, %arg1 : i32
    %c2_i32_0 = arith.constant 2 : i32
    %2 = arith.minsi %1, %c2_i32_0 : i32
    %c0_i32 = arith.constant 0 : i32
    %c0_i32_1 = arith.constant 0 : i32
    return %2, %c0_i32 : i32, i32
  }
  func.func @transform_2(%arg0: i32, %arg1: i32) -> (i32, i32) {
    %c2_i32 = arith.constant 2 : i32
    %0 = arith.muli %arg0, %c2_i32 : i32
    %1 = arith.addi %0, %arg1 : i32
    %c2_i32_0 = arith.constant 2 : i32
    %2 = arith.minsi %1, %c2_i32_0 : i32
    %c0_i32 = arith.constant 0 : i32
    %c0_i32_1 = arith.constant 0 : i32
    return %2, %c0_i32 : i32, i32
  }
  func.func @transform_3(%arg0: i32, %arg1: i32) -> (i32, i32) {
    %c0_i32 = arith.constant 0 : i32
    %c0_i32_0 = arith.constant 0 : i32
    %c0_i32_1 = arith.constant 0 : i32
    return %c0_i32, %c0_i32_0 : i32, i32
  }
  func.func @transform_4(%arg0: i32, %arg1: i32) -> (i32, i32) {
    %c0_i32 = arith.constant 0 : i32
    %c0_i32_0 = arith.constant 0 : i32
    %c0_i32_1 = arith.constant 0 : i32
    return %c0_i32, %c0_i32_0 : i32, i32
  }
  func.func @transform_5(%arg0: i32, %arg1: i32) -> (i32, i32) {
    %c0_i32 = arith.constant 0 : i32
    %c0_i32_0 = arith.constant 0 : i32
    %c0_i32_1 = arith.constant 0 : i32
    return %c0_i32, %c0_i32_0 : i32, i32
  }
  func.func @transform_6(%arg0: i32, %arg1: i32) -> (i32, i32) {
    %c0_i32 = arith.constant 0 : i32
    %c0_i32_0 = arith.constant 0 : i32
    %c0_i32_1 = arith.constant 0 : i32
    return %c0_i32, %c0_i32_0 : i32, i32
  }
  func.func @transform_7(%arg0: i32, %arg1: i32) -> (i32, i32) {
    %c0_i32 = arith.constant 0 : i32
    %c0_i32_0 = arith.constant 0 : i32
    %c0_i32_1 = arith.constant 0 : i32
    return %c0_i32, %c0_i32_0 : i32, i32
  }
  func.func @transform_8(%arg0: i32, %arg1: i32) -> (i32, i32) {
    %c0_i32 = arith.constant 0 : i32
    %c0_i32_0 = arith.constant 0 : i32
    %c0_i32_1 = arith.constant 0 : i32
    return %c0_i32, %c0_i32_0 : i32, i32
  }
  func.func @transform_9(%arg0: i32, %arg1: i32) -> (i32, i32) {
    %c0_i32 = arith.constant 0 : i32
    %c0_i32_0 = arith.constant 0 : i32
    return %arg0, %c0_i32 : i32, i32
  }
  func.func @transform_10(%arg0: i32, %arg1: i32) -> (i32, i32) {
    %c0_i32 = arith.constant 0 : i32
    %c0_i32_0 = arith.constant 0 : i32
    return %arg0, %c0_i32 : i32, i32
  }
  func.func @transform_11(%arg0: i32, %arg1: i32) -> (i32, i32) {
    %c0_i32 = arith.constant 0 : i32
    %c0_i32_0 = arith.constant 0 : i32
    return %arg0, %c0_i32 : i32, i32
  }
}

</mosaic_0001>

<llo_original>
// kernel: mine_forward.1
$region0: #{mine_forward.1}
  #allocation0 [shape = 'u32[]', space=smem, size = 0x4, offset = 0x4, fixed_abs, tag = 'smem constant byte address 0x4 - core index']
  #allocation1 [shape = 'u32[144,128]{1,0:T(1,128)}', space=vmem, size = 0x12000, scoped, tag = 'internal scratch']
  #allocation2 [shape = 'f32[256,32]{1,0:T(8,128)}', space=vmem, size = 0x20000, scoped, tag = 'scratch operand']
  #allocation3 [shape = 'f32[1,1]{1,0:T(1,128)}', space=vmem, size = 0x200, scoped, tag = 'scratch operand']
  #allocation4 [shape = 'f32[1,1]{1,0:T(1,128)}', space=vmem, size = 0x200, scoped, tag = 'scratch operand']
  #allocation5 [shape = 'f32[1,1]{1,0:T(1,128)}', space=vmem, size = 0x200, scoped, tag = 'scratch operand']
  #allocation6 [shape = 'f32[1,1]{1,0:T(1,128)S(1)}', space=vmem, size = 0x200, scoped, tag = 'scoped memory for mine_forward.1']
  %s0 = inlined_call_operand.vmem [shape: f32[300,16], index: 0, kind: input, shape index: {}]
  %s1 = inlined_call_operand.vmem [shape: f32[300,16], index: 1, kind: input, shape index: {}]
  %s2 = inlined_call_operand.vmem [shape: f32[300,16], index: 2, kind: input, shape index: {}]
  %s3 = inlined_call_operand.vmem [shape: f32[1,32], index: 3, kind: input, shape index: {}]
  %s4 = inlined_call_operand.vmem [shape: f32[1,32], index: 4, kind: input, shape index: {}]
  %s5 = inlined_call_operand.vmem [shape: f32[32,16], index: 5, kind: input, shape index: {}]
  %s6 = inlined_call_operand.vmem [shape: f32[1,16], index: 6, kind: input, shape index: {}]
  %s7 = inlined_call_operand.vmem [shape: f32[1,16], index: 7, kind: input, shape index: {}]
  %s8 = inlined_call_operand.<no memory space> [shape: f32[1,1], index: 8, kind: input, shape index: {}]
  %s9 = inlined_call_operand.vmem [shape: f32[16,128], index: 9, kind: output, shape index: {0}]
  %s10 = inlined_call_operand.vmem [shape: f32[16,128], index: 10, kind: output, shape index: {1}]
  %s11 = inlined_call_operand.vmem [shape: f32[16,128], index: 11, kind: output, shape index: {2}]
  %12 = xla_tuple %s9, %s10, %s11
  %s13 = sld [smem:[#allocation0]]
  $region93: #{mine_forward.1} parent=0
    _
  %s15 = ssub.s32 1, %s13
  %s16 = scalar_select 0, %s15, %s13
  %v17 = vstv %s8
  %18 = vst [vmem:[#allocation6] sm:$0x1] %v17
  loop: start=0, step=1, limit=6
  $region2: #{mine_forward.1} parent=0 // loop_pre_header
    _
  $region3: #{mine_forward.1} parent=0 // loop_header
    %s20 = sphi 0, %s24
    %p21 = scmp.ge.s32.totalorder %s20, 6
    %s27 = sphi 0, %s39
    %s28 = sphi 0, %s35
    %s29 = sphi 0, %s27
    %s30 = sphi 0, %s28
    %s31 = sphi 0, %s29
    %s32 = sphi 0, %s30
    %s50 = sphi 0, %s52
    %s53 = sphi 0, %s50
    %s54 = sphi 0, %s53
    %s70 = sphi 0, %s54
    %s84 = sphi 0, %s86
    %s87 = sphi 0, %s84
    %s88 = sphi 0, %s87
    %s104 = sphi 0, %s88
    %s118 = sphi 0, %s120
    %s121 = sphi 0, %s118
    %s122 = sphi 0, %s121
    %s138 = sphi 0, %s122
    %s142 = sphi 0, %s142
    %s144 = sphi 0, %s142
    %s145 = sphi 0, %s144
    %s159 = sphi 0, %s145
    %s163 = sphi 0, %s163
    %s165 = sphi 0, %s163
    %s166 = sphi 0, %s165
    %s180 = sphi 0, %s166
    %s184 = sphi 0, %s184
    %s186 = sphi 0, %s184
    %s187 = sphi 0, %s186
    %s201 = sphi 0, %s187
    %s205 = sphi 0, %s205
    %s207 = sphi 0, %s205
    %s208 = sphi 0, %s207
    %s222 = sphi 0, %s208
    %s226 = sphi 0, %s226
    %s228 = sphi 0, %s226
    %s229 = sphi 0, %s228
    %s243 = sphi 0, %s229
    %s247 = sphi 0, %s247
    %s249 = sphi 0, %s247
    %s250 = sphi 0, %s249
    %s264 = sphi 0, %s250
    %s270 = sphi 0, %s272
    %s273 = sphi 0, %s270
    %s274 = sphi 0, %s273
    %s290 = sphi 0, %s274
    %s296 = sphi 0, %s298
    %s299 = sphi 0, %s296
    %s300 = sphi 0, %s299
    %s316 = sphi 0, %s300
    %s322 = sphi 0, %s324
    %s325 = sphi 0, %s322
    %s326 = sphi 0, %s325
    %s342 = sphi 0, %s326
  $region4: #{mine_forward.1} parent=0 // loop_header_branch
    %23 = sbr.rel (%p21) target = $region8
  $region5: #{mine_forward.1} parent=0 // loop_body
    %s25 = ssub.s32 %s20, 1
    %s26 = ssub.s32 %s20, 2
    %s33 = sadd.s32 1, %s28
    %p34 = scmp.ge.s32.totalorder %s33, 2
    %s35 = scalar_select %p34, 0, %s33
    %s36 = sadd.s32 1, %s27
    %s37 = scalar_select %p34, %s36, %s27
    %p38 = scmp.ge.s32.totalorder %s37, 2
    %s39 = scalar_select %p38, 0, %s37
    %s40 = smul.u32 %s27, 2
    %s41 = sadd.s32 %s40, %s28
    %p42 = scmp.lt.s32.totalorder %s41, 2
    %s43 = scalar_select %p42, %s41, 2
    %s44 = smul.u32 %s39, 2
    %s45 = sadd.s32 %s44, %s35
    %p46 = scmp.lt.s32.totalorder %s45, 2
    %s47 = scalar_select %p46, %s45, 2
    %s48 = ssub.s32 %s43, %s47
    %p49 = scmp.eq.s32.totalorder %s48, 0
    %s51 = sadd.s32 %s50, 1
    %s52 = scalar_select %p49, %s50, %s51
    %p55 = pneg %p49
    %p56 = scmp.eq.s32.totalorder %s20, 3
    %p57 = por %p55, %p56
    %p58 = scmp.ne.s32.totalorder %s50, %s53
    %p59 = scmp.eq.s32.totalorder %s20, 0
    %p60 = por %p58, %p59
    %p61 = scmp.ne.s32.totalorder %s50, %s53
    %p62 = scmp.eq.s32.totalorder %s25, 3
    %p63 = por %p61, %p62
    %p64 = scmp.ne.s32.totalorder %s53, %s54
    %p65 = scmp.eq.s32.totalorder %s25, 0
    %p66 = por %p64, %p65
    %p67 = scmp.ne.s32.totalorder %s53, %s54
    %p68 = scmp.eq.s32.totalorder %s26, 3
    %p69 = por %p67, %p68
    %p71 = scmp.ne.s32.totalorder %s54, %s70
    %p72 = scmp.eq.s32.totalorder %s26, 0
    %p73 = por %p71, %p72
    %s74 = smul.u32 %s27, 2
    %s75 = sadd.s32 %s74, %s28
    %p76 = scmp.lt.s32.totalorder %s75, 2
    %s77 = scalar_select %p76, %s75, 2
    %s78 = smul.u32 %s39, 2
    %s79 = sadd.s32 %s78, %s35
    %p80 = scmp.lt.s32.totalorder %s79, 2
    %s81 = scalar_select %p80, %s79, 2
    %s82 = ssub.s32 %s77, %s81
    %p83 = scmp.eq.s32.totalorder %s82, 0
    %s85 = sadd.s32 %s84, 1
    %s86 = scalar_select %p83, %s84, %s85
    %p89 = pneg %p83
    %p90 = scmp.eq.s32.totalorder %s20, 3
    %p91 = por %p89, %p90
    %p92 = scmp.ne.s32.totalorder %s84, %s87
    %p93 = scmp.eq.s32.totalorder %s20, 0
    %p94 = por %p92, %p93
    %p95 = scmp.ne.s32.totalorder %s84, %s87
    %p96 = scmp.eq.s32.totalorder %s25, 3
    %p97 = por %p95, %p96
    %p98 = scmp.ne.s32.totalorder %s87, %s88
    %p99 = scmp.eq.s32.totalorder %s25, 0
    %p100 = por %p98, %p99
    %p101 = scmp.ne.s32.totalorder %s87, %s88
    %p102 = scmp.eq.s32.totalorder %s26, 3
    %p103 = por %p101, %p102
    %p105 = scmp.ne.s32.totalorder %s88, %s104
    %p106 = scmp.eq.s32.totalorder %s26, 0
    %p107 = por %p105, %p106
    %s108 = smul.u32 %s27, 2
    %s109 = sadd.s32 %s108, %s28
    %p110 = scmp.lt.s32.totalorder %s109, 2
    %s111 = scalar_select %p110, %s109, 2
    %s112 = smul.u32 %s39, 2
    %s113 = sadd.s32 %s112, %s35
    %p114 = scmp.lt.s32.totalorder %s113, 2
    %s115 = scalar_select %p114, %s113, 2
    %s116 = ssub.s32 %s111, %s115
    %p117 = scmp.eq.s32.totalorder %s116, 0
    %s119 = sadd.s32 %s118, 1
    %s120 = scalar_select %p117, %s118, %s119
    %p123 = pneg %p117
    %p124 = scmp.eq.s32.totalorder %s20, 3
    %p125 = por %p123, %p124
    %p126 = scmp.ne.s32.totalorder %s118, %s121
    %p127 = scmp.eq.s32.totalorder %s20, 0
    %p128 = por %p126, %p127
    %p129 = scmp.ne.s32.totalorder %s118, %s121
    %p130 = scmp.eq.s32.totalorder %s25, 3
    %p131 = por %p129, %p130
    %p132 = scmp.ne.s32.totalorder %s121, %s122
    %p133 = scmp.eq.s32.totalorder %s25, 0
    %p134 = por %p132, %p133
    %p135 = scmp.ne.s32.totalorder %s121, %s122
    %p136 = scmp.eq.s32.totalorder %s26, 3
    %p137 = por %p135, %p136
    %p139 = scmp.ne.s32.totalorder %s122, %s138
    %p140 = scmp.eq.s32.totalorder %s26, 0
    %p141 = por %p139, %p140
    %s143 = sadd.s32 %s142, 1
    %p146 = scmp.eq.s32.totalorder %s20, 3
    %p147 = scmp.ne.s32.totalorder %s142, %s144
    %p148 = scmp.eq.s32.totalorder %s20, 0
    %p149 = por %p147, %p148
    %p150 = scmp.ne.s32.totalorder %s142, %s144
    %p151 = scmp.eq.s32.totalorder %s25, 3
    %p152 = por %p150, %p151
    %p153 = scmp.ne.s32.totalorder %s144, %s145
    %p154 = scmp.eq.s32.totalorder %s25, 0
    %p155 = por %p153, %p154
    %p156 = scmp.ne.s32.totalorder %s144, %s145
    %p157 = scmp.eq.s32.totalorder %s26, 3
    %p158 = por %p156, %p157
    %p160 = scmp.ne.s32.totalorder %s145, %s159
    %p161 = scmp.eq.s32.totalorder %s26, 0
    %p162 = por %p160, %p161
    %s164 = sadd.s32 %s163, 1
    %p167 = scmp.eq.s32.totalorder %s20, 3
    %p168 = scmp.ne.s32.totalorder %s163, %s165
    %p169 = scmp.eq.s32.totalorder %s20, 0
    %p170 = por %p168, %p169
    %p171 = scmp.ne.s32.totalorder %s163, %s165
    %p172 = scmp.eq.s32.totalorder %s25, 3
    %p173 = por %p171, %p172
    %p174 = scmp.ne.s32.totalorder %s165, %s166
    %p175 = scmp.eq.s32.totalorder %s25, 0
    %p176 = por %p174, %p175
    %p177 = scmp.ne.s32.totalorder %s165, %s166
    %p178 = scmp.eq.s32.totalorder %s26, 3
    %p179 = por %p177, %p178
    %p181 = scmp.ne.s32.totalorder %s166, %s180
    %p182 = scmp.eq.s32.totalorder %s26, 0
    %p183 = por %p181, %p182
    %s185 = sadd.s32 %s184, 1
    %p188 = scmp.eq.s32.totalorder %s20, 3
    %p189 = scmp.ne.s32.totalorder %s184, %s186
    %p190 = scmp.eq.s32.totalorder %s20, 0
    %p191 = por %p189, %p190
    %p192 = scmp.ne.s32.totalorder %s184, %s186
    %p193 = scmp.eq.s32.totalorder %s25, 3
    %p194 = por %p192, %p193
    %p195 = scmp.ne.s32.totalorder %s186, %s187
    %p196 = scmp.eq.s32.totalorder %s25, 0
    %p197 = por %p195, %p196
    %p198 = scmp.ne.s32.totalorder %s186, %s187
    %p199 = scmp.eq.s32.totalorder %s26, 3
    %p200 = por %p198, %p199
    %p202 = scmp.ne.s32.totalorder %s187, %s201
    %p203 = scmp.eq.s32.totalorder %s26, 0
    %p204 = por %p202, %p203
    %s206 = sadd.s32 %s205, 1
    %p209 = scmp.eq.s32.totalorder %s20, 3
    %p210 = scmp.ne.s32.totalorder %s205, %s207
    %p211 = scmp.eq.s32.totalorder %s20, 0
    %p212 = por %p210, %p211
    %p213 = scmp.ne.s32.totalorder %s205, %s207
    %p214 = scmp.eq.s32.totalorder %s25, 3
    %p215 = por %p213, %p214
    %p216 = scmp.ne.s32.totalorder %s207, %s208
    %p217 = scmp.eq.s32.totalorder %s25, 0
    %p218 = por %p216, %p217
    %p219 = scmp.ne.s32.totalorder %s207, %s208
    %p220 = scmp.eq.s32.totalorder %s26, 3
    %p221 = por %p219, %p220
    %p223 = scmp.ne.s32.totalorder %s208, %s222
    %p224 = scmp.eq.s32.totalorder %s26, 0
    %p225 = por %p223, %p224
    %s227 = sadd.s32 %s226, 1
    %p230 = scmp.eq.s32.totalorder %s20, 3
    %p231 = scmp.ne.s32.totalorder %s226, %s228
    %p232 = scmp.eq.s32.totalorder %s20, 0
    %p233 = por %p231, %p232
    %p234 = scmp.ne.s32.totalorder %s226, %s228
    %p235 = scmp.eq.s32.totalorder %s25, 3
    %p236 = por %p234, %p235
    %p237 = scmp.ne.s32.totalorder %s228, %s229
    %p238 = scmp.eq.s32.totalorder %s25, 0
    %p239 = por %p237, %p238
    %p240 = scmp.ne.s32.totalorder %s228, %s229
    %p241 = scmp.eq.s32.totalorder %s26, 3
    %p242 = por %p240, %p241
    %p244 = scmp.ne.s32.totalorder %s229, %s243
    %p245 = scmp.eq.s32.totalorder %s26, 0
    %p246 = por %p244, %p245
    %s248 = sadd.s32 %s247, 1
    %p251 = scmp.eq.s32.totalorder %s20, 3
    %p252 = scmp.ne.s32.totalorder %s247, %s249
    %p253 = scmp.eq.s32.totalorder %s20, 0
    %p254 = por %p252, %p253
    %p255 = scmp.ne.s32.totalorder %s247, %s249
    %p256 = scmp.eq.s32.totalorder %s25, 3
    %p257 = por %p255, %p256
    %p258 = scmp.ne.s32.totalorder %s249, %s250
    %p259 = scmp.eq.s32.totalorder %s25, 0
    %p260 = por %p258, %p259
    %p261 = scmp.ne.s32.totalorder %s249, %s250
    %p262 = scmp.eq.s32.totalorder %s26, 3
    %p263 = por %p261, %p262
    %p265 = scmp.ne.s32.totalorder %s250, %s264
    %p266 = scmp.eq.s32.totalorder %s26, 0
    %p267 = por %p265, %p266
    %s268 = ssub.s32 %s27, %s39
    %p269 = scmp.eq.s32.totalorder %s268, 0
    %s271 = sadd.s32 %s270, 1
    %s272 = scalar_select %p269, %s270, %s271
    %p275 = pneg %p269
    %p276 = scmp.eq.s32.totalorder %s20, 3
    %p277 = por %p275, %p276
    %p278 = scmp.ne.s32.totalorder %s270, %s273
    %p279 = scmp.eq.s32.totalorder %s20, 0
    %p280 = por %p278, %p279
    %p281 = scmp.ne.s32.totalorder %s270, %s273
    %p282 = scmp.eq.s32.totalorder %s25, 3
    %p283 = por %p281, %p282
    %p284 = scmp.ne.s32.totalorder %s273, %s274
    %p285 = scmp.eq.s32.totalorder %s25, 0
    %p286 = por %p284, %p285
    %p287 = scmp.ne.s32.totalorder %s273, %s274
    %p288 = scmp.eq.s32.totalorder %s26, 3
    %p289 = por %p287, %p288
    %p291 = scmp.ne.s32.totalorder %s274, %s290
    %p292 = scmp.eq.s32.totalorder %s26, 0
    %p293 = por %p291, %p292
    %s294 = ssub.s32 %s27, %s39
    %p295 = scmp.eq.s32.totalorder %s294, 0
    %s297 = sadd.s32 %s296, 1
    %s298 = scalar_select %p295, %s296, %s297
    %p301 = pneg %p295
    %p302 = scmp.eq.s32.totalorder %s20, 3
    %p303 = por %p301, %p302
    %p304 = scmp.ne.s32.totalorder %s296, %s299
    %p305 = scmp.eq.s32.totalorder %s20, 0
    %p306 = por %p304, %p305
    %p307 = scmp.ne.s32.totalorder %s296, %s299
    %p308 = scmp.eq.s32.totalorder %s25, 3
    %p309 = por %p307, %p308
    %p310 = scmp.ne.s32.totalorder %s299, %s300
    %p311 = scmp.eq.s32.totalorder %s25, 0
    %p312 = por %p310, %p311
    %p313 = scmp.ne.s32.totalorder %s299, %s300
    %p314 = scmp.eq.s32.totalorder %s26, 3
    %p315 = por %p313, %p314
    %p317 = scmp.ne.s32.totalorder %s300, %s316
    %p318 = scmp.eq.s32.totalorder %s26, 0
    %p319 = por %p317, %p318
    %s320 = ssub.s32 %s27, %s39
    %p321 = scmp.eq.s32.totalorder %s320, 0
    %s323 = sadd.s32 %s322, 1
    %s324 = scalar_select %p321, %s322, %s323
    %p327 = pneg %p321
    %p328 = scmp.eq.s32.totalorder %s20, 3
    %p329 = por %p327, %p328
    %p330 = scmp.ne.s32.totalorder %s322, %s325
    %p331 = scmp.eq.s32.totalorder %s20, 0
    %p332 = por %p330, %p331
    %p333 = scmp.ne.s32.totalorder %s322, %s325
    %p334 = scmp.eq.s32.totalorder %s25, 3
    %p335 = por %p333, %p334
    %p336 = scmp.ne.s32.totalorder %s325, %s326
    %p337 = scmp.eq.s32.totalorder %s25, 0
    %p338 = por %p336, %p337
    %p339 = scmp.ne.s32.totalorder %s325, %s326
    %p340 = scmp.eq.s32.totalorder %s26, 3
    %p341 = por %p339, %p340
    %p343 = scmp.ne.s32.totalorder %s326, %s342
    %p344 = scmp.eq.s32.totalorder %s26, 0
    %p345 = por %p343, %p344
    %p346 = scmp.le.s32.totalorder 1, %s20
    %p347 = scmp.lt.s32.totalorder %s20, 5
    %p348 = pnand %p346, %p347
    %p349 = pneg %p348
    // Predicated region
    $region9: #{mine_forward.1} parent=5 // pred_check
      _
    $region10: #{mine_forward.1} parent=5 // pred_check_branch
      %351 = sbr.rel (%p348) target = $region12
    $region11: #{mine_forward.1} parent=5 // pred_region
      %s352 = ssub.s32 %s20, 1
      // Predicated region
      $region13: #{mine_forward.1} parent=11 // pred_check
        %p353 = pneg %p155
      $region14: #{mine_forward.1} parent=11 // pred_check_branch
        %355 = sbr.rel (%p353) target = $region16
      $region15: #{mine_forward.1} parent=11 // pred_region
        _
      $region16: #{mine_forward.1} parent=11 // pred_fallthru
        _
      // Predicated region
      $region17: #{mine_forward.1} parent=11 // pred_check
        %p356 = pneg %p176
      $region18: #{mine_forward.1} parent=11 // pred_check_branch
        %358 = sbr.rel (%p356) target = $region20
      $region19: #{mine_forward.1} parent=11 // pred_region
        _
      $region20: #{mine_forward.1} parent=11 // pred_fallthru
        _
      // Predicated region
      $region21: #{mine_forward.1} parent=11 // pred_check
        %p359 = pneg %p197
      $region22: #{mine_forward.1} parent=11 // pred_check_branch
        %361 = sbr.rel (%p359) target = $region24
      $region23: #{mine_forward.1} parent=11 // pred_region
        _
      $region24: #{mine_forward.1} parent=11 // pred_fallthru
        _
      // Predicated region
      $region25: #{mine_forward.1} parent=11 // pred_check
        %p362 = pneg %p218
      $region26: #{mine_forward.1} parent=11 // pred_check_branch
        %364 = sbr.rel (%p362) target = $region28
      $region27: #{mine_forward.1} parent=11 // pred_region
        _
      $region28: #{mine_forward.1} parent=11 // pred_fallthru
        _
      // Predicated region
      $region29: #{mine_forward.1} parent=11 // pred_check
        %p365 = pneg %p239
      $region30: #{mine_forward.1} parent=11 // pred_check_branch
        %367 = sbr.rel (%p365) target = $region32
      $region31: #{mine_forward.1} parent=11 // pred_region
        _
      $region32: #{mine_forward.1} parent=11 // pred_fallthru
        _
      // Predicated region
      $region33: #{mine_forward.1} parent=11 // pred_check
        %p368 = pneg %p260
      $region34: #{mine_forward.1} parent=11 // pred_check_branch
        %370 = sbr.rel (%p368) target = $region36
      $region35: #{mine_forward.1} parent=11 // pred_region
        _
      $region36: #{mine_forward.1} parent=11 // pred_fallthru
        _
    $region12: #{mine_forward.1} parent=5 // pred_fallthru
      _
    %p371 = scmp.lt.s32.totalorder %s20, 4
    // Predicated region
    $region37: #{mine_forward.1} parent=5 // pred_check
      %p372 = pneg %p371
    $region38: #{mine_forward.1} parent=5 // pred_check_branch
      %374 = sbr.rel (%p372) target = $region40
    $region39: #{mine_forward.1} parent=5 // pred_region
      // Predicated region
      $region41: #{mine_forward.1} parent=39 // pred_check
        %p375 = pneg %p60
      $region42: #{mine_forward.1} parent=39 // pred_check_branch
        %377 = sbr.rel (%p375) target = $region44
      $region43: #{mine_forward.1} parent=39 // pred_region
        %s378 = smul.u32 %s27, 2
        %s379 = sadd.s32 %s378, %s28
        %p380 = scmp.lt.s32.totalorder %s379, 2
        %s381 = scalar_select %p380, %s379, 2
        %s382 = smul.u32 16, %s381
        %s383 = ssub.s32 38, %s382
        %p384 = scmp.lt.s32.totalorder %s383, 16
        %s385 = scalar_select %p384, %s383, 16
        %s386 = smul.u32 128, %s385
        %p387 = scmp.lt.s32.totalorder %s382, 37
        %s388 = scalar_select %p387, %s382, 37
        %s389 = smul.addr %s388, 8
        %s390 = scalar_lea.vmem %s0, %s389
        %s391 = smul.u32 %s27, 2
        %s392 = sadd.s32 %s391, %s28
        %p393 = scmp.lt.s32.totalorder %s392, 2
        %s394 = scalar_select %p393, %s392, 2
        %s395 = smul.u32 16, %s394
        %s396 = ssub.s32 38, %s395
        %p397 = scmp.lt.s32.totalorder %s396, 16
        %s398 = scalar_select %p397, %s396, 16
        %s399 = smul.u32 128, %s398
      $region44: #{mine_forward.1} parent=39 // pred_fallthru
        _
      // Predicated region
      $region45: #{mine_forward.1} parent=39 // pred_check
        %p400 = pneg %p94
      $region46: #{mine_forward.1} parent=39 // pred_check_branch
        %402 = sbr.rel (%p400) target = $region48
      $region47: #{mine_forward.1} parent=39 // pred_region
        %s403 = smul.u32 %s27, 2
        %s404 = sadd.s32 %s403, %s28
        %p405 = scmp.lt.s32.totalorder %s404, 2
        %s406 = scalar_select %p405, %s404, 2
        %s407 = smul.u32 16, %s406
        %s408 = ssub.s32 38, %s407
        %p409 = scmp.lt.s32.totalorder %s408, 16
        %s410 = scalar_select %p409, %s408, 16
        %s411 = smul.u32 128, %s410
        %p412 = scmp.lt.s32.totalorder %s407, 37
        %s413 = scalar_select %p412, %s407, 37
        %s414 = smul.addr %s413, 8
        %s415 = scalar_lea.vmem %s1, %s414
        %s416 = smul.u32 %s27, 2
        %s417 = sadd.s32 %s416, %s28
        %p418 = scmp.lt.s32.totalorder %s417, 2
        %s419 = scalar_select %p418, %s417, 2
        %s420 = smul.u32 16, %s419
        %s421 = ssub.s32 38, %s420
        %p422 = scmp.lt.s32.totalorder %s421, 16
        %s423 = scalar_select %p422, %s421, 16
        %s424 = smul.u32 128, %s423
      $region48: #{mine_forward.1} parent=39 // pred_fallthru
        _
      // Predicated region
      $region49: #{mine_forward.1} parent=39 // pred_check
        %p425 = pneg %p128
      $region50: #{mine_forward.1} parent=39 // pred_check_branch
        %427 = sbr.rel (%p425) target = $region52
      $region51: #{mine_forward.1} parent=39 // pred_region
        %s428 = smul.u32 %s27, 2
        %s429 = sadd.s32 %s428, %s28
        %p430 = scmp.lt.s32.totalorder %s429, 2
        %s431 = scalar_select %p430, %s429, 2
        %s432 = smul.u32 16, %s431
        %s433 = ssub.s32 38, %s432
        %p434 = scmp.lt.s32.totalorder %s433, 16
        %s435 = scalar_select %p434, %s433, 16
        %s436 = smul.u32 128, %s435
        %p437 = scmp.lt.s32.totalorder %s432, 37
        %s438 = scalar_select %p437, %s432, 37
        %s439 = smul.addr %s438, 8
        %s440 = scalar_lea.vmem %s2, %s439
        %s441 = smul.u32 %s27, 2
        %s442 = sadd.s32 %s441, %s28
        %p443 = scmp.lt.s32.totalorder %s442, 2
        %s444 = scalar_select %p443, %s442, 2
        %s445 = smul.u32 16, %s444
        %s446 = ssub.s32 38, %s445
        %p447 = scmp.lt.s32.totalorder %s446, 16
        %s448 = scalar_select %p447, %s446, 16
        %s449 = smul.u32 128, %s448
      $region52: #{mine_forward.1} parent=39 // pred_fallthru
        _
    $region40: #{mine_forward.1} parent=5 // pred_fallthru
      _
    %p450 = scmp.le.s32.totalorder 1, %s20
    %p451 = scmp.lt.s32.totalorder %s20, 5
    %p452 = pnand %p450, %p451
    %p453 = pneg %p452
    // Predicated region
    $region53: #{mine_forward.1} parent=5 // pred_check
      _
    $region54: #{mine_forward.1} parent=5 // pred_check_branch
      %455 = sbr.rel (%p452) target = $region56
    $region55: #{mine_forward.1} parent=5 // pred_region
      %s456 = ssub.s32 %s20, 1
      %s457 = smul.u32 %s29, 2
      %s458 = sadd.s32 %s457, %s30
      %p459 = scmp.lt.s32.totalorder %s458, 2
      %s460 = scalar_select %p459, %s458, 2
      %s461 = smul.u32 16, %s460
      %s462 = ssub.s32 38, %s461
      %p463 = scmp.lt.s32.totalorder %s462, 16
      %s464 = scalar_select %p463, %s462, 16
      %s465 = smul.u32 128, %s464
      %p466 = scmp.lt.s32.totalorder %s461, 37
      %s467 = scalar_select %p466, %s461, 37
      %s468 = smul.addr %s467, 8
      %s469 = scalar_lea.vmem %s0, %s468
      %p470 = pneg %p66
      %p471 = pneg %p63
      %s472 = smul.u32 %s29, 2
      %s473 = sadd.s32 %s472, %s30
      %p474 = scmp.lt.s32.totalorder %s473, 2
      %s475 = scalar_select %p474, %s473, 2
      %s476 = smul.u32 16, %s475
      %s477 = ssub.s32 38, %s476
      %p478 = scmp.lt.s32.totalorder %s477, 16
      %s479 = scalar_select %p478, %s477, 16
      %s480 = smul.u32 128, %s479
      %p481 = scmp.lt.s32.totalorder %s476, 37
      %s482 = scalar_select %p481, %s476, 37
      %s483 = smul.addr %s482, 8
      %s484 = scalar_lea.vmem %s1, %s483
      %p485 = pneg %p100
      %p486 = pneg %p97
      %s487 = smul.u32 %s29, 2
      %s488 = sadd.s32 %s487, %s30
      %p489 = scmp.lt.s32.totalorder %s488, 2
      %s490 = scalar_select %p489, %s488, 2
      %s491 = smul.u32 16, %s490
      %s492 = ssub.s32 38, %s491
      %p493 = scmp.lt.s32.totalorder %s492, 16
      %s494 = scalar_select %p493, %s492, 16
      %s495 = smul.u32 128, %s494
      %p496 = scmp.lt.s32.totalorder %s491, 37
      %s497 = scalar_select %p496, %s491, 37
      %s498 = smul.addr %s497, 8
      %s499 = scalar_lea.vmem %s2, %s498
      %p500 = pneg %p134
      %p501 = pneg %p131
      %p502 = pneg %p155
      %p503 = pneg %p152
      %p504 = pneg %p176
      %p505 = pneg %p173
      %p506 = pneg %p197
      %p507 = pneg %p194
      %p508 = pneg %p218
      %p509 = pneg %p215
      %p510 = pneg %p239
      %p511 = pneg %p236
      %p512 = pneg %p260
      %p513 = pneg %p257
      %p514 = pneg %p286
      %p515 = pneg %p283
      %p516 = scmp.lt.s32.totalorder %s29, 1
      %s517 = scalar_select %p516, %s29, 1
      %s518 = smul.addr %s517, 8
      %s519 = scalar_lea.vmem %s9, %s518
      %p520 = pneg %p312
      %p521 = pneg %p309
      %p522 = scmp.lt.s32.totalorder %s29, 1
      %s523 = scalar_select %p522, %s29, 1
      %s524 = smul.addr %s523, 8
      %s525 = scalar_lea.vmem %s10, %s524
      %p526 = pneg %p338
      %p527 = pneg %p335
      %p528 = scmp.lt.s32.totalorder %s29, 1
      %s529 = scalar_select %p528, %s29, 1
      %s530 = smul.addr %s529, 8
      %s531 = scalar_lea.vmem %s11, %s530
      %s532 = smul.u32 %s29, 2
      %s533 = sadd.s32 %s532, %s30
      %p534 = scmp.lt.s32.totalorder %s533, 2
      %s535 = scalar_select %p534, %s533, 2
      %s536 = smul.u32 16, %s535
      %s537 = ssub.s32 38, %s536
      %p538 = scmp.lt.s32.totalorder %s537, 16
      %s539 = scalar_select %p538, %s537, 16
      %s540 = smul.u32 128, %s539
      %p541 = scmp.lt.s32.totalorder %s536, 37
      %s542 = scalar_select %p541, %s536, 37
      %s543 = smul.addr %s542, 8
      %s544 = scalar_lea.vmem %s0, %s543
      %s545 = smul.u32 %s29, 2
      %s546 = sadd.s32 %s545, %s30
      %p547 = scmp.lt.s32.totalorder %s546, 2
      %s548 = scalar_select %p547, %s546, 2
      %s549 = smul.u32 16, %s548
      %s550 = ssub.s32 38, %s549
      %p551 = scmp.lt.s32.totalorder %s550, 16
      %s552 = scalar_select %p551, %s550, 16
      %s553 = smul.u32 128, %s552
      %s554 = smul.u32 %s29, 2
      %s555 = sadd.s32 %s554, %s30
      %p556 = scmp.lt.s32.totalorder %s555, 2
      %s557 = scalar_select %p556, %s555, 2
      %s558 = smul.u32 16, %s557
      %s559 = ssub.s32 38, %s558
      %p560 = scmp.lt.s32.totalorder %s559, 16
      %s561 = scalar_select %p560, %s559, 16
      %s562 = smul.u32 128, %s561
      %p563 = scmp.lt.s32.totalorder %s558, 37
      %s564 = scalar_select %p563, %s558, 37
      %s565 = smul.addr %s564, 8
      %s566 = scalar_lea.vmem %s1, %s565
      %s567 = smul.u32 %s29, 2
      %s568 = sadd.s32 %s567, %s30
      %p569 = scmp.lt.s32.totalorder %s568, 2
      %s570 = scalar_select %p569, %s568, 2
      %s571 = smul.u32 16, %s570
      %s572 = ssub.s32 38, %s571
      %p573 = scmp.lt.s32.totalorder %s572, 16
      %s574 = scalar_select %p573, %s572, 16
      %s575 = smul.u32 128, %s574
      %s576 = smul.u32 %s29, 2
      %s577 = sadd.s32 %s576, %s30
      %p578 = scmp.lt.s32.totalorder %s577, 2
      %s579 = scalar_select %p578, %s577, 2
      %s580 = smul.u32 16, %s579
      %s581 = ssub.s32 38, %s580
      %p582 = scmp.lt.s32.totalorder %s581, 16
      %s583 = scalar_select %p582, %s581, 16
      %s584 = smul.u32 128, %s583
      %p585 = scmp.lt.s32.totalorder %s580, 37
      %s586 = scalar_select %p585, %s580, 37
      %s587 = smul.addr %s586, 8
      %s588 = scalar_lea.vmem %s2, %s587
      %s589 = smul.u32 %s29, 2
      %s590 = sadd.s32 %s589, %s30
      %p591 = scmp.lt.s32.totalorder %s590, 2
      %s592 = scalar_select %p591, %s590, 2
      %s593 = smul.u32 16, %s592
      %s594 = ssub.s32 38, %s593
      %p595 = scmp.lt.s32.totalorder %s594, 16
      %s596 = scalar_select %p595, %s594, 16
      %s597 = smul.u32 128, %s596
      %p598 = scmp.lt.s32.totalorder %s29, 1
      %s599 = scalar_select %p598, %s29, 1
      %s600 = smul.addr %s599, 8
      %s601 = scalar_lea.vmem %s9, %s600
      %p602 = scmp.lt.s32.totalorder %s29, 1
      %s603 = scalar_select %p602, %s29, 1
      %s604 = smul.addr %s603, 8
      %s605 = scalar_lea.vmem %s10, %s604
      %p606 = scmp.lt.s32.totalorder %s29, 1
      %s607 = scalar_select %p606, %s29, 1
      %s608 = smul.addr %s607, 8
      %s609 = scalar_lea.vmem %s11, %s608
      %p610 = scmp.eq.s32.totalorder %s30, 0
      // Predicated region
      $region57: #{mine_forward.1} parent=55 // pred_check
        %p611 = pneg %p610
      $region58: #{mine_forward.1} parent=55 // pred_check_branch
        %613 = sbr.rel (%p611) target = $region60
      $region59: #{mine_forward.1} parent=55 // pred_region
        %vm614 = vcmask 0
        %615 = vst.msk [vmem:[#allocation3] sm:$0x1] %vm614, 0.0
        %616 = vst.msk [vmem:[#allocation4] sm:$0x1] %vm614, -inf
        %617 = vst.msk [vmem:[#allocation5] sm:$0x1] %vm614, 0.0
      $region60: #{mine_forward.1} parent=55 // pred_fallthru
        _
      %s618 = smul.u32 %s29, 2
      %s619 = sadd.s32 %s618, %s30
      %s620 = smul.u32 %s619, 128
      %v621 = vlaneseq
      %v622 = vshrl.u32 %v621, 7
      %v623 = vadd.s32 %v622, 8
      %v624 = vadd.s32 %v622, 16
      %v625 = vadd.s32 %v622, 24
      %v626 = vadd.s32 %v622, 32
      %v627 = vadd.s32 %v622, 40
      %v628 = vadd.s32 %v622, 48
      %v629 = vadd.s32 %v622, 56
      %v630 = vadd.s32 %v622, 64
      %v631 = vadd.s32 %v622, 72
      %v632 = vadd.s32 %v622, 80
      %v633 = vadd.s32 %v622, 88
      %v634 = vadd.s32 %v622, 96
      %v635 = vadd.s32 %v622, 104
      %v636 = vadd.s32 %v622, 112
      %v637 = vadd.s32 %v622, 120
      %v638 = vstv %s620
      %v639 = vadd.s32 %v638, %v622
      %v640 = vadd.s32 %v638, %v623
      %v641 = vadd.s32 %v638, %v624
      %v642 = vadd.s32 %v638, %v625
      %v643 = vadd.s32 %v638, %v626
      %v644 = vadd.s32 %v638, %v627
      %v645 = vadd.s32 %v638, %v628
      %v646 = vadd.s32 %v638, %v629
      %v647 = vadd.s32 %v638, %v630
      %v648 = vadd.s32 %v638, %v631
      %v649 = vadd.s32 %v638, %v632
      %v650 = vadd.s32 %v638, %v633
      %v651 = vadd.s32 %v638, %v634
      %v652 = vadd.s32 %v638, %v635
      %v653 = vadd.s32 %v638, %v636
      %v654 = vadd.s32 %v638, %v637
      %vm655 = vcmp.lt.s32.totalorder %v639, 300
      %vm656 = vcmp.lt.s32.totalorder %v640, 300
      %vm657 = vcmp.lt.s32.totalorder %v641, 300
      %vm658 = vcmp.lt.s32.totalorder %v642, 300
      %vm659 = vcmp.lt.s32.totalorder %v643, 300
      %vm660 = vcmp.lt.s32.totalorder %v644, 300
      %vm661 = vcmp.lt.s32.totalorder %v645, 300
      %vm662 = vcmp.lt.s32.totalorder %v646, 300
      %vm663 = vcmp.lt.s32.totalorder %v647, 300
      %vm664 = vcmp.lt.s32.totalorder %v648, 300
      %vm665 = vcmp.lt.s32.totalorder %v649, 300
      %vm666 = vcmp.lt.s32.totalorder %v650, 300
      %vm667 = vcmp.lt.s32.totalorder %v651, 300
      %vm668 = vcmp.lt.s32.totalorder %v652, 300
      %vm669 = vcmp.lt.s32.totalorder %v653, 300
      %vm670 = vcmp.lt.s32.totalorder %v654, 300
      %v671 = vld [vmem:[%s544] sm:$0xff]
      %v672 = vld [vmem:[%s544 + $0x8] sm:$0xff]
      %v673 = vld [vmem:[%s544 + $0x10] sm:$0xff]
      %v674 = vld [vmem:[%s544 + $0x18] sm:$0xff]
      %v675 = vld [vmem:[%s544 + $0x20] sm:$0xff]
      %v676 = vld [vmem:[%s544 + $0x28] sm:$0xff]
      %v677 = vld [vmem:[%s544 + $0x30] sm:$0xff]
      %v678 = vld [vmem:[%s544 + $0x38] sm:$0xff]
      %v679 = vld [vmem:[%s544 + $0x40] sm:$0xff]
      %v680 = vld [vmem:[%s544 + $0x48] sm:$0xff]
      %v681 = vld [vmem:[%s544 + $0x50] sm:$0xff]
      %v682 = vld [vmem:[%s544 + $0x58] sm:$0xff]
      %v683 = vld [vmem:[%s544 + $0x60] sm:$0xff]
      %v684 = vld [vmem:[%s544 + $0x68] sm:$0xff]
      %v685 = vld [vmem:[%s544 + $0x70] sm:$0xff]
      %v686 = vld [vmem:[%s544 + $0x78] sm:$0xff]
      %vm687 = vcmask 130048
      %688 = vst.msk [vmem:[#allocation2] sm:$0xff] %vm687, %v671
      %689 = vst.msk [vmem:[#allocation2 + $0x8] sm:$0xff] %vm687, %v672
      %690 = vst.msk [vmem:[#allocation2 + $0x10] sm:$0xff] %vm687, %v673
      %691 = vst.msk [vmem:[#allocation2 + $0x18] sm:$0xff] %vm687, %v674
      %692 = vst.msk [vmem:[#allocation2 + $0x20] sm:$0xff] %vm687, %v675
      %693 = vst.msk [vmem:[#allocation2 + $0x28] sm:$0xff] %vm687, %v676
      %694 = vst.msk [vmem:[#allocation2 + $0x30] sm:$0xff] %vm687, %v677
      %695 = vst.msk [vmem:[#allocation2 + $0x38] sm:$0xff] %vm687, %v678
      %696 = vst.msk [vmem:[#allocation2 + $0x40] sm:$0xff] %vm687, %v679
      %697 = vst.msk [vmem:[#allocation2 + $0x48] sm:$0xff] %vm687, %v680
      %698 = vst.msk [vmem:[#allocation2 + $0x50] sm:$0xff] %vm687, %v681
      %699 = vst.msk [vmem:[#allocation2 + $0x58] sm:$0xff] %vm687, %v682
      %700 = vst.msk [vmem:[#allocation2 + $0x60] sm:$0xff] %vm687, %v683
      %701 = vst.msk [vmem:[#allocation2 + $0x68] sm:$0xff] %vm687, %v684
      %702 = vst.msk [vmem:[#allocation2 + $0x70] sm:$0xff] %vm687, %v685
      %703 = vst.msk [vmem:[#allocation2 + $0x78] sm:$0xff] %vm687, %v686
      %v704 = vld [vmem:[%s544] sm:$0xff]
      %v705 = vld [vmem:[%s544 + $0x8] sm:$0xff]
      %v706 = vld [vmem:[%s544 + $0x10] sm:$0xff]
      %v707 = vld [vmem:[%s544 + $0x18] sm:$0xff]
      %v708 = vld [vmem:[%s544 + $0x20] sm:$0xff]
      %v709 = vld [vmem:[%s544 + $0x28] sm:$0xff]
      %v710 = vld [vmem:[%s544 + $0x30] sm:$0xff]
      %v711 = vld [vmem:[%s544 + $0x38] sm:$0xff]
      %v712 = vld [vmem:[%s544 + $0x40] sm:$0xff]
      %v713 = vld [vmem:[%s544 + $0x48] sm:$0xff]
      %v714 = vld [vmem:[%s544 + $0x50] sm:$0xff]
      %v715 = vld [vmem:[%s544 + $0x58] sm:$0xff]
      %v716 = vld [vmem:[%s544 + $0x60] sm:$0xff]
      %v717 = vld [vmem:[%s544 + $0x68] sm:$0xff]
      %v718 = vld [vmem:[%s544 + $0x70] sm:$0xff]
      %v719 = vld [vmem:[%s544 + $0x78] sm:$0xff]
      %720 = vst.msk [vmem:[#allocation2 + $0x80] sm:$0xff] %vm687, %v704
      %721 = vst.msk [vmem:[#allocation2 + $0x88] sm:$0xff] %vm687, %v705
      %722 = vst.msk [vmem:[#allocation2 + $0x90] sm:$0xff] %vm687, %v706
      %723 = vst.msk [vmem:[#allocation2 + $0x98] sm:$0xff] %vm687, %v707
      %724 = vst.msk [vmem:[#allocation2 + $0xa0] sm:$0xff] %vm687, %v708
      %725 = vst.msk [vmem:[#allocation2 + $0xa8] sm:$0xff] %vm687, %v709
      %726 = vst.msk [vmem:[#allocation2 + $0xb0] sm:$0xff] %vm687, %v710
      %727 = vst.msk [vmem:[#allocation2 + $0xb8] sm:$0xff] %vm687, %v711
      %728 = vst.msk [vmem:[#allocation2 + $0xc0] sm:$0xff] %vm687, %v712
      %729 = vst.msk [vmem:[#allocation2 + $0xc8] sm:$0xff] %vm687, %v713
      %730 = vst.msk [vmem:[#allocation2 + $0xd0] sm:$0xff] %vm687, %v714
      %731 = vst.msk [vmem:[#allocation2 + $0xd8] sm:$0xff] %vm687, %v715
      %732 = vst.msk [vmem:[#allocation2 + $0xe0] sm:$0xff] %vm687, %v716
      %733 = vst.msk [vmem:[#allocation2 + $0xe8] sm:$0xff] %vm687, %v717
      %734 = vst.msk [vmem:[#allocation2 + $0xf0] sm:$0xff] %vm687, %v718
      %735 = vst.msk [vmem:[#allocation2 + $0xf8] sm:$0xff] %vm687, %v719
      %v736 = vld [vmem:[%s566] sm:$0xff]
      %v737 = vld [vmem:[%s566 + $0x8] sm:$0xff]
      %v738 = vld [vmem:[%s566 + $0x10] sm:$0xff]
      %v739 = vld [vmem:[%s566 + $0x18] sm:$0xff]
      %v740 = vld [vmem:[%s566 + $0x20] sm:$0xff]
      %v741 = vld [vmem:[%s566 + $0x28] sm:$0xff]
      %v742 = vld [vmem:[%s566 + $0x30] sm:$0xff]
      %v743 = vld [vmem:[%s566 + $0x38] sm:$0xff]
      %v744 = vld [vmem:[%s566 + $0x40] sm:$0xff]
      %v745 = vld [vmem:[%s566 + $0x48] sm:$0xff]
      %v746 = vld [vmem:[%s566 + $0x50] sm:$0xff]
      %v747 = vld [vmem:[%s566 + $0x58] sm:$0xff]
      %v748 = vld [vmem:[%s566 + $0x60] sm:$0xff]
      %v749 = vld [vmem:[%s566 + $0x68] sm:$0xff]
      %v750 = vld [vmem:[%s566 + $0x70] sm:$0xff]
      %v751 = vld [vmem:[%s566 + $0x78] sm:$0xff]
      %768 = vrot.lane.b32.xlu0 %v736, 16
      %v769 = vpop.permute.xlu0 %768
      %770 = vrot.lane.b32.xlu0 %v737, 16
      %v771 = vpop.permute.xlu0 %770
      %772 = vrot.lane.b32.xlu0 %v738, 16
      %v773 = vpop.permute.xlu0 %772
      %774 = vrot.lane.b32.xlu0 %v739, 16
      %v775 = vpop.permute.xlu0 %774
      %776 = vrot.lane.b32.xlu0 %v740, 16
      %v777 = vpop.permute.xlu0 %776
      %778 = vrot.lane.b32.xlu0 %v741, 16
      %v779 = vpop.permute.xlu0 %778
      %780 = vrot.lane.b32.xlu0 %v742, 16
      %v781 = vpop.permute.xlu0 %780
      %782 = vrot.lane.b32.xlu0 %v743, 16
      %v783 = vpop.permute.xlu0 %782
      %784 = vrot.lane.b32.xlu0 %v744, 16
      %v785 = vpop.permute.xlu0 %784
      %786 = vrot.lane.b32.xlu0 %v745, 16
      %v787 = vpop.permute.xlu0 %786
      %788 = vrot.lane.b32.xlu0 %v746, 16
      %v789 = vpop.permute.xlu0 %788
      %790 = vrot.lane.b32.xlu0 %v747, 16
      %v791 = vpop.permute.xlu0 %790
      %792 = vrot.lane.b32.xlu0 %v748, 16
      %v793 = vpop.permute.xlu0 %792
      %794 = vrot.lane.b32.xlu0 %v749, 16
      %v795 = vpop.permute.xlu0 %794
      %796 = vrot.lane.b32.xlu0 %v750, 16
      %v797 = vpop.permute.xlu0 %796
      %798 = vrot.lane.b32.xlu0 %v751, 16
      %v799 = vpop.permute.xlu0 %798
      %vm816 = vcmask 261248
      %817 = vst.msk [vmem:[#allocation2] sm:$0xff] %vm816, %v769
      %818 = vst.msk [vmem:[#allocation2 + $0x8] sm:$0xff] %vm816, %v771
      %819 = vst.msk [vmem:[#allocation2 + $0x10] sm:$0xff] %vm816, %v773
      %820 = vst.msk [vmem:[#allocation2 + $0x18] sm:$0xff] %vm816, %v775
      %821 = vst.msk [vmem:[#allocation2 + $0x20] sm:$0xff] %vm816, %v777
      %822 = vst.msk [vmem:[#allocation2 + $0x28] sm:$0xff] %vm816, %v779
      %823 = vst.msk [vmem:[#allocation2 + $0x30] sm:$0xff] %vm816, %v781
      %824 = vst.msk [vmem:[#allocation2 + $0x38] sm:$0xff] %vm816, %v783
      %825 = vst.msk [vmem:[#allocation2 + $0x40] sm:$0xff] %vm816, %v785
      %826 = vst.msk [vmem:[#allocation2 + $0x48] sm:$0xff] %vm816, %v787
      %827 = vst.msk [vmem:[#allocation2 + $0x50] sm:$0xff] %vm816, %v789
      %828 = vst.msk [vmem:[#allocation2 + $0x58] sm:$0xff] %vm816, %v791
      %829 = vst.msk [vmem:[#allocation2 + $0x60] sm:$0xff] %vm816, %v793
      %830 = vst.msk [vmem:[#allocation2 + $0x68] sm:$0xff] %vm816, %v795
      %831 = vst.msk [vmem:[#allocation2 + $0x70] sm:$0xff] %vm816, %v797
      %832 = vst.msk [vmem:[#allocation2 + $0x78] sm:$0xff] %vm816, %v799
      %v833 = vld [vmem:[%s588] sm:$0xff]
      %v834 = vld [vmem:[%s588 + $0x8] sm:$0xff]
      %v835 = vld [vmem:[%s588 + $0x10] sm:$0xff]
      %v836 = vld [vmem:[%s588 + $0x18] sm:$0xff]
      %v837 = vld [vmem:[%s588 + $0x20] sm:$0xff]
      %v838 = vld [vmem:[%s588 + $0x28] sm:$0xff]
      %v839 = vld [vmem:[%s588 + $0x30] sm:$0xff]
      %v840 = vld [vmem:[%s588 + $0x38] sm:$0xff]
      %v841 = vld [vmem:[%s588 + $0x40] sm:$0xff]
      %v842 = vld [vmem:[%s588 + $0x48] sm:$0xff]
      %v843 = vld [vmem:[%s588 + $0x50] sm:$0xff]
      %v844 = vld [vmem:[%s588 + $0x58] sm:$0xff]
      %v845 = vld [vmem:[%s588 + $0x60] sm:$0xff]
      %v846 = vld [vmem:[%s588 + $0x68] sm:$0xff]
      %v847 = vld [vmem:[%s588 + $0x70] sm:$0xff]
      %v848 = vld [vmem:[%s588 + $0x78] sm:$0xff]
      %865 = vrot.lane.b32.xlu0 %v833, 16
      %v866 = vpop.permute.xlu0 %865
      %867 = vrot.lane.b32.xlu0 %v834, 16
      %v868 = vpop.permute.xlu0 %867
      %869 = vrot.lane.b32.xlu0 %v835, 16
      %v870 = vpop.permute.xlu0 %869
      %871 = vrot.lane.b32.xlu0 %v836, 16
      %v872 = vpop.permute.xlu0 %871
      %873 = vrot.lane.b32.xlu0 %v837, 16
      %v874 = vpop.permute.xlu0 %873
      %875 = vrot.lane.b32.xlu0 %v838, 16
      %v876 = vpop.permute.xlu0 %875
      %877 = vrot.lane.b32.xlu0 %v839, 16
      %v878 = vpop.permute.xlu0 %877
      %879 = vrot.lane.b32.xlu0 %v840, 16
      %v880 = vpop.permute.xlu0 %879
      %881 = vrot.lane.b32.xlu0 %v841, 16
      %v882 = vpop.permute.xlu0 %881
      %883 = vrot.lane.b32.xlu0 %v842, 16
      %v884 = vpop.permute.xlu0 %883
      %885 = vrot.lane.b32.xlu0 %v843, 16
      %v886 = vpop.permute.xlu0 %885
      %887 = vrot.lane.b32.xlu0 %v844, 16
      %v888 = vpop.permute.xlu0 %887
      %889 = vrot.lane.b32.xlu0 %v845, 16
      %v890 = vpop.permute.xlu0 %889
      %891 = vrot.lane.b32.xlu0 %v846, 16
      %v892 = vpop.permute.xlu0 %891
      %893 = vrot.lane.b32.xlu0 %v847, 16
      %v894 = vpop.permute.xlu0 %893
      %895 = vrot.lane.b32.xlu0 %v848, 16
      %v896 = vpop.permute.xlu0 %895
      %913 = vst.msk [vmem:[#allocation2 + $0x80] sm:$0xff] %vm816, %v866
      %914 = vst.msk [vmem:[#allocation2 + $0x88] sm:$0xff] %vm816, %v868
      %915 = vst.msk [vmem:[#allocation2 + $0x90] sm:$0xff] %vm816, %v870
      %916 = vst.msk [vmem:[#allocation2 + $0x98] sm:$0xff] %vm816, %v872
      %917 = vst.msk [vmem:[#allocation2 + $0xa0] sm:$0xff] %vm816, %v874
      %918 = vst.msk [vmem:[#allocation2 + $0xa8] sm:$0xff] %vm816, %v876
      %919 = vst.msk [vmem:[#allocation2 + $0xb0] sm:$0xff] %vm816, %v878
      %920 = vst.msk [vmem:[#allocation2 + $0xb8] sm:$0xff] %vm816, %v880
      %921 = vst.msk [vmem:[#allocation2 + $0xc0] sm:$0xff] %vm816, %v882
      %922 = vst.msk [vmem:[#allocation2 + $0xc8] sm:$0xff] %vm816, %v884
      %923 = vst.msk [vmem:[#allocation2 + $0xd0] sm:$0xff] %vm816, %v886
      %924 = vst.msk [vmem:[#allocation2 + $0xd8] sm:$0xff] %vm816, %v888
      %925 = vst.msk [vmem:[#allocation2 + $0xe0] sm:$0xff] %vm816, %v890
      %926 = vst.msk [vmem:[#allocation2 + $0xe8] sm:$0xff] %vm816, %v892
      %927 = vst.msk [vmem:[#allocation2 + $0xf0] sm:$0xff] %vm816, %v894
      %928 = vst.msk [vmem:[#allocation2 + $0xf8] sm:$0xff] %vm816, %v896
      %v929 = vld [vmem:[#allocation2] sm:$0xff]
      %v930 = vld [vmem:[#allocation2 + $0x8] sm:$0xff]
      %v931 = vld [vmem:[#allocation2 + $0x10] sm:$0xff]
      %v932 = vld [vmem:[#allocation2 + $0x18] sm:$0xff]
      %v933 = vld [vmem:[#allocation2 + $0x20] sm:$0xff]
      %v934 = vld [vmem:[#allocation2 + $0x28] sm:$0xff]
      %v935 = vld [vmem:[#allocation2 + $0x30] sm:$0xff]
      %v936 = vld [vmem:[#allocation2 + $0x38] sm:$0xff]
      %v937 = vld [vmem:[#allocation2 + $0x40] sm:$0xff]
      %v938 = vld [vmem:[#allocation2 + $0x48] sm:$0xff]
      %v939 = vld [vmem:[#allocation2 + $0x50] sm:$0xff]
      %v940 = vld [vmem:[#allocation2 + $0x58] sm:$0xff]
      %v941 = vld [vmem:[#allocation2 + $0x60] sm:$0xff]
      %v942 = vld [vmem:[#allocation2 + $0x68] sm:$0xff]
      %v943 = vld [vmem:[#allocation2 + $0x70] sm:$0xff]
      %v944 = vld [vmem:[#allocation2 + $0x78] sm:$0xff]
      %v945 = vld [vmem:[#allocation2 + $0x80] sm:$0xff]
      %v946 = vld [vmem:[#allocation2 + $0x88] sm:$0xff]
      %v947 = vld [vmem:[#allocation2 + $0x90] sm:$0xff]
      %v948 = vld [vmem:[#allocation2 + $0x98] sm:$0xff]
      %v949 = vld [vmem:[#allocation2 + $0xa0] sm:$0xff]
      %v950 = vld [vmem:[#allocation2 + $0xa8] sm:$0xff]
      %v951 = vld [vmem:[#allocation2 + $0xb0] sm:$0xff]
      %v952 = vld [vmem:[#allocation2 + $0xb8] sm:$0xff]
      %v953 = vld [vmem:[#allocation2 + $0xc0] sm:$0xff]
      %v954 = vld [vmem:[#allocation2 + $0xc8] sm:$0xff]
      %v955 = vld [vmem:[#allocation2 + $0xd0] sm:$0xff]
      %v956 = vld [vmem:[#allocation2 + $0xd8] sm:$0xff]
      %v957 = vld [vmem:[#allocation2 + $0xe0] sm:$0xff]
      %v958 = vld [vmem:[#allocation2 + $0xe8] sm:$0xff]
      %v959 = vld [vmem:[#allocation2 + $0xf0] sm:$0xff]
      %v960 = vld [vmem:[#allocation2 + $0xf8] sm:$0xff]
      %vm961 = vcmask 261120
      %v962 = vsel %vm961, %v929, 0.0
      %963 = vadd.xlane.f32.xlu0 %v962
      %v964 = vpop.xlane.xlu0 %963
      %v965 = vsel %vm961, %v930, 0.0
      %966 = vadd.xlane.f32.xlu0 %v965
      %v967 = vpop.xlane.xlu0 %966
      %v968 = vsel %vm961, %v931, 0.0
      %969 = vadd.xlane.f32.xlu0 %v968
      %v970 = vpop.xlane.xlu0 %969
      %v971 = vsel %vm961, %v932, 0.0
      %972 = vadd.xlane.f32.xlu0 %v971
      %v973 = vpop.xlane.xlu0 %972
      %v974 = vsel %vm961, %v933, 0.0
      %975 = vadd.xlane.f32.xlu0 %v974
      %v976 = vpop.xlane.xlu0 %975
      %v977 = vsel %vm961, %v934, 0.0
      %978 = vadd.xlane.f32.xlu0 %v977
      %v979 = vpop.xlane.xlu0 %978
      %v980 = vsel %vm961, %v935, 0.0
      %981 = vadd.xlane.f32.xlu0 %v980
      %v982 = vpop.xlane.xlu0 %981
      %v983 = vsel %vm961, %v936, 0.0
      %984 = vadd.xlane.f32.xlu0 %v983
      %v985 = vpop.xlane.xlu0 %984
      %v986 = vsel %vm961, %v937, 0.0
      %987 = vadd.xlane.f32.xlu0 %v986
      %v988 = vpop.xlane.xlu0 %987
      %v989 = vsel %vm961, %v938, 0.0
      %990 = vadd.xlane.f32.xlu0 %v989
      %v991 = vpop.xlane.xlu0 %990
      %v992 = vsel %vm961, %v939, 0.0
      %993 = vadd.xlane.f32.xlu0 %v992
      %v994 = vpop.xlane.xlu0 %993
      %v995 = vsel %vm961, %v940, 0.0
      %996 = vadd.xlane.f32.xlu0 %v995
      %v997 = vpop.xlane.xlu0 %996
      %v998 = vsel %vm961, %v941, 0.0
      %999 = vadd.xlane.f32.xlu0 %v998
      %v1000 = vpop.xlane.xlu0 %999
      %v1001 = vsel %vm961, %v942, 0.0
      %1002 = vadd.xlane.f32.xlu0 %v1001
      %v1003 = vpop.xlane.xlu0 %1002
      %v1004 = vsel %vm961, %v943, 0.0
      %1005 = vadd.xlane.f32.xlu0 %v1004
      %v1006 = vpop.xlane.xlu0 %1005
      %v1007 = vsel %vm961, %v944, 0.0
      %1008 = vadd.xlane.f32.xlu0 %v1007
      %v1009 = vpop.xlane.xlu0 %1008
      %v1010 = vsel %vm961, %v945, 0.0
      %1011 = vadd.xlane.f32.xlu0 %v1010
      %v1012 = vpop.xlane.xlu0 %1011
      %v1013 = vsel %vm961, %v946, 0.0
      %1014 = vadd.xlane.f32.xlu0 %v1013
      %v1015 = vpop.xlane.xlu0 %1014
      %v1016 = vsel %vm961, %v947, 0.0
      %1017 = vadd.xlane.f32.xlu0 %v1016
      %v1018 = vpop.xlane.xlu0 %1017
      %v1019 = vsel %vm961, %v948, 0.0
      %1020 = vadd.xlane.f32.xlu0 %v1019
      %v1021 = vpop.xlane.xlu0 %1020
      %v1022 = vsel %vm961, %v949, 0.0
      %1023 = vadd.xlane.f32.xlu0 %v1022
      %v1024 = vpop.xlane.xlu0 %1023
      %v1025 = vsel %vm961, %v950, 0.0
      %1026 = vadd.xlane.f32.xlu0 %v1025
      %v1027 = vpop.xlane.xlu0 %1026
      %v1028 = vsel %vm961, %v951, 0.0
      %1029 = vadd.xlane.f32.xlu0 %v1028
      %v1030 = vpop.xlane.xlu0 %1029
      %v1031 = vsel %vm961, %v952, 0.0
      %1032 = vadd.xlane.f32.xlu0 %v1031
      %v1033 = vpop.xlane.xlu0 %1032
      %v1034 = vsel %vm961, %v953, 0.0
      %1035 = vadd.xlane.f32.xlu0 %v1034
      %v1036 = vpop.xlane.xlu0 %1035
      %v1037 = vsel %vm961, %v954, 0.0
      %1038 = vadd.xlane.f32.xlu0 %v1037
      %v1039 = vpop.xlane.xlu0 %1038
      %v1040 = vsel %vm961, %v955, 0.0
      %1041 = vadd.xlane.f32.xlu0 %v1040
      %v1042 = vpop.xlane.xlu0 %1041
      %v1043 = vsel %vm961, %v956, 0.0
      %1044 = vadd.xlane.f32.xlu0 %v1043
      %v1045 = vpop.xlane.xlu0 %1044
      %v1046 = vsel %vm961, %v957, 0.0
      %1047 = vadd.xlane.f32.xlu0 %v1046
      %v1048 = vpop.xlane.xlu0 %1047
      %v1049 = vsel %vm961, %v958, 0.0
      %1050 = vadd.xlane.f32.xlu0 %v1049
      %v1051 = vpop.xlane.xlu0 %1050
      %v1052 = vsel %vm961, %v959, 0.0
      %1053 = vadd.xlane.f32.xlu0 %v1052
      %v1054 = vpop.xlane.xlu0 %1053
      %v1055 = vsel %vm961, %v960, 0.0
      %1056 = vadd.xlane.f32.xlu0 %v1055
      %v1057 = vpop.xlane.xlu0 %1056
      %v1058 = vrcp.pop 32.0
      %v1059 = vmul.f32 %v964, %v1058
      %v1060 = vmul.f32 %v967, %v1058
      %v1061 = vmul.f32 %v970, %v1058
      %v1062 = vmul.f32 %v973, %v1058
      %v1063 = vmul.f32 %v976, %v1058
      %v1064 = vmul.f32 %v979, %v1058
      %v1065 = vmul.f32 %v982, %v1058
      %v1066 = vmul.f32 %v985, %v1058
      %v1067 = vmul.f32 %v988, %v1058
      %v1068 = vmul.f32 %v991, %v1058
      %v1069 = vmul.f32 %v994, %v1058
      %v1070 = vmul.f32 %v997, %v1058
      %v1071 = vmul.f32 %v1000, %v1058
      %v1072 = vmul.f32 %v1003, %v1058
      %v1073 = vmul.f32 %v1006, %v1058
      %v1074 = vmul.f32 %v1009, %v1058
      %v1075 = vmul.f32 %v1012, %v1058
      %v1076 = vmul.f32 %v1015, %v1058
      %v1077 = vmul.f32 %v1018, %v1058
      %v1078 = vmul.f32 %v1021, %v1058
      %v1079 = vmul.f32 %v1024, %v1058
      %v1080 = vmul.f32 %v1027, %v1058
      %v1081 = vmul.f32 %v1030, %v1058
      %v1082 = vmul.f32 %v1033, %v1058
      %v1083 = vmul.f32 %v1036, %v1058
      %v1084 = vmul.f32 %v1039, %v1058
      %v1085 = vmul.f32 %v1042, %v1058
      %v1086 = vmul.f32 %v1045, %v1058
      %v1087 = vmul.f32 %v1048, %v1058
      %v1088 = vmul.f32 %v1051, %v1058
      %v1089 = vmul.f32 %v1054, %v1058
      %v1090 = vmul.f32 %v1057, %v1058
      %v1091 = vsub.f32 %v929, %v1059
      %v1092 = vsub.f32 %v930, %v1060
      %v1093 = vsub.f32 %v931, %v1061
      %v1094 = vsub.f32 %v932, %v1062
      %v1095 = vsub.f32 %v933, %v1063
      %v1096 = vsub.f32 %v934, %v1064
      %v1097 = vsub.f32 %v935, %v1065
      %v1098 = vsub.f32 %v936, %v1066
      %v1099 = vsub.f32 %v937, %v1067
      %v1100 = vsub.f32 %v938, %v1068
      %v1101 = vsub.f32 %v939, %v1069
      %v1102 = vsub.f32 %v940, %v1070
      %v1103 = vsub.f32 %v941, %v1071
      %v1104 = vsub.f32 %v942, %v1072
      %v1105 = vsub.f32 %v943, %v1073
      %v1106 = vsub.f32 %v944, %v1074
      %v1107 = vsub.f32 %v945, %v1075
      %v1108 = vsub.f32 %v946, %v1076
      %v1109 = vsub.f32 %v947, %v1077
      %v1110 = vsub.f32 %v948, %v1078
      %v1111 = vsub.f32 %v949, %v1079
      %v1112 = vsub.f32 %v950, %v1080
      %v1113 = vsub.f32 %v951, %v1081
      %v1114 = vsub.f32 %v952, %v1082
      %v1115 = vsub.f32 %v953, %v1083
      %v1116 = vsub.f32 %v954, %v1084
      %v1117 = vsub.f32 %v955, %v1085
      %v1118 = vsub.f32 %v956, %v1086
      %v1119 = vsub.f32 %v957, %v1087
      %v1120 = vsub.f32 %v958, %v1088
      %v1121 = vsub.f32 %v959, %v1089
      %v1122 = vsub.f32 %v960, %v1090
      %v1123 = vmul.f32 %v1091, %v1091
      %v1124 = vmul.f32 %v1092, %v1092
      %v1125 = vmul.f32 %v1093, %v1093
      %v1126 = vmul.f32 %v1094, %v1094
      %v1127 = vmul.f32 %v1095, %v1095
      %v1128 = vmul.f32 %v1096, %v1096
      %v1129 = vmul.f32 %v1097, %v1097
      %v1130 = vmul.f32 %v1098, %v1098
      %v1131 = vmul.f32 %v1099, %v1099
      %v1132 = vmul.f32 %v1100, %v1100
      %v1133 = vmul.f32 %v1101, %v1101
      %v1134 = vmul.f32 %v1102, %v1102
      %v1135 = vmul.f32 %v1103, %v1103
      %v1136 = vmul.f32 %v1104, %v1104
      %v1137 = vmul.f32 %v1105, %v1105
      %v1138 = vmul.f32 %v1106, %v1106
      %v1139 = vmul.f32 %v1107, %v1107
      %v1140 = vmul.f32 %v1108, %v1108
      %v1141 = vmul.f32 %v1109, %v1109
      %v1142 = vmul.f32 %v1110, %v1110
      %v1143 = vmul.f32 %v1111, %v1111
      %v1144 = vmul.f32 %v1112, %v1112
      %v1145 = vmul.f32 %v1113, %v1113
      %v1146 = vmul.f32 %v1114, %v1114
      %v1147 = vmul.f32 %v1115, %v1115
      %v1148 = vmul.f32 %v1116, %v1116
      %v1149 = vmul.f32 %v1117, %v1117
      %v1150 = vmul.f32 %v1118, %v1118
      %v1151 = vmul.f32 %v1119, %v1119
      %v1152 = vmul.f32 %v1120, %v1120
      %v1153 = vmul.f32 %v1121, %v1121
      %v1154 = vmul.f32 %v1122, %v1122
      %v1155 = vsel %vm961, %v1123, 0.0
      %1156 = vadd.xlane.f32.xlu0 %v1155
      %v1157 = vpop.xlane.xlu0 %1156
      %v1158 = vsel %vm961, %v1124, 0.0
      %1159 = vadd.xlane.f32.xlu0 %v1158
      %v1160 = vpop.xlane.xlu0 %1159
      %v1161 = vsel %vm961, %v1125, 0.0
      %1162 = vadd.xlane.f32.xlu0 %v1161
      %v1163 = vpop.xlane.xlu0 %1162
      %v1164 = vsel %vm961, %v1126, 0.0
      %1165 = vadd.xlane.f32.xlu0 %v1164
      %v1166 = vpop.xlane.xlu0 %1165
      %v1167 = vsel %vm961, %v1127, 0.0
      %1168 = vadd.xlane.f32.xlu0 %v1167
      %v1169 = vpop.xlane.xlu0 %1168
      %v1170 = vsel %vm961, %v1128, 0.0
      %1171 = vadd.xlane.f32.xlu0 %v1170
      %v1172 = vpop.xlane.xlu0 %1171
      %v1173 = vsel %vm961, %v1129, 0.0
      %1174 = vadd.xlane.f32.xlu0 %v1173
      %v1175 = vpop.xlane.xlu0 %1174
      %v1176 = vsel %vm961, %v1130, 0.0
      %1177 = vadd.xlane.f32.xlu0 %v1176
      %v1178 = vpop.xlane.xlu0 %1177
      %v1179 = vsel %vm961, %v1131, 0.0
      %1180 = vadd.xlane.f32.xlu0 %v1179
      %v1181 = vpop.xlane.xlu0 %1180
      %v1182 = vsel %vm961, %v1132, 0.0
      %1183 = vadd.xlane.f32.xlu0 %v1182
      %v1184 = vpop.xlane.xlu0 %1183
      %v1185 = vsel %vm961, %v1133, 0.0
      %1186 = vadd.xlane.f32.xlu0 %v1185
      %v1187 = vpop.xlane.xlu0 %1186
      %v1188 = vsel %vm961, %v1134, 0.0
      %1189 = vadd.xlane.f32.xlu0 %v1188
      %v1190 = vpop.xlane.xlu0 %1189
      %v1191 = vsel %vm961, %v1135, 0.0
      %1192 = vadd.xlane.f32.xlu0 %v1191
      %v1193 = vpop.xlane.xlu0 %1192
      %v1194 = vsel %vm961, %v1136, 0.0
      %1195 = vadd.xlane.f32.xlu0 %v1194
      %v1196 = vpop.xlane.xlu0 %1195
      %v1197 = vsel %vm961, %v1137, 0.0
      %1198 = vadd.xlane.f32.xlu0 %v1197
      %v1199 = vpop.xlane.xlu0 %1198
      %v1200 = vsel %vm961, %v1138, 0.0
      %1201 = vadd.xlane.f32.xlu0 %v1200
      %v1202 = vpop.xlane.xlu0 %1201
      %v1203 = vsel %vm961, %v1139, 0.0
      %1204 = vadd.xlane.f32.xlu0 %v1203
      %v1205 = vpop.xlane.xlu0 %1204
      %v1206 = vsel %vm961, %v1140, 0.0
      %1207 = vadd.xlane.f32.xlu0 %v1206
      %v1208 = vpop.xlane.xlu0 %1207
      %v1209 = vsel %vm961, %v1141, 0.0
      %1210 = vadd.xlane.f32.xlu0 %v1209
      %v1211 = vpop.xlane.xlu0 %1210
      %v1212 = vsel %vm961, %v1142, 0.0
      %1213 = vadd.xlane.f32.xlu0 %v1212
      %v1214 = vpop.xlane.xlu0 %1213
      %v1215 = vsel %vm961, %v1143, 0.0
      %1216 = vadd.xlane.f32.xlu0 %v1215
      %v1217 = vpop.xlane.xlu0 %1216
      %v1218 = vsel %vm961, %v1144, 0.0
      %1219 = vadd.xlane.f32.xlu0 %v1218
      %v1220 = vpop.xlane.xlu0 %1219
      %v1221 = vsel %vm961, %v1145, 0.0
      %1222 = vadd.xlane.f32.xlu0 %v1221
      %v1223 = vpop.xlane.xlu0 %1222
      %v1224 = vsel %vm961, %v1146, 0.0
      %1225 = vadd.xlane.f32.xlu0 %v1224
      %v1226 = vpop.xlane.xlu0 %1225
      %v1227 = vsel %vm961, %v1147, 0.0
      %1228 = vadd.xlane.f32.xlu0 %v1227
      %v1229 = vpop.xlane.xlu0 %1228
      %v1230 = vsel %vm961, %v1148, 0.0
      %1231 = vadd.xlane.f32.xlu0 %v1230
      %v1232 = vpop.xlane.xlu0 %1231
      %v1233 = vsel %vm961, %v1149, 0.0
      %1234 = vadd.xlane.f32.xlu0 %v1233
      %v1235 = vpop.xlane.xlu0 %1234
      %v1236 = vsel %vm961, %v1150, 0.0
      %1237 = vadd.xlane.f32.xlu0 %v1236
      %v1238 = vpop.xlane.xlu0 %1237
      %v1239 = vsel %vm961, %v1151, 0.0
      %1240 = vadd.xlane.f32.xlu0 %v1239
      %v1241 = vpop.xlane.xlu0 %1240
      %v1242 = vsel %vm961, %v1152, 0.0
      %1243 = vadd.xlane.f32.xlu0 %v1242
      %v1244 = vpop.xlane.xlu0 %1243
      %v1245 = vsel %vm961, %v1153, 0.0
      %1246 = vadd.xlane.f32.xlu0 %v1245
      %v1247 = vpop.xlane.xlu0 %1246
      %v1248 = vsel %vm961, %v1154, 0.0
      %1249 = vadd.xlane.f32.xlu0 %v1248
      %v1250 = vpop.xlane.xlu0 %1249
      %v1251 = vmul.f32 %v1157, %v1058
      %v1252 = vmul.f32 %v1160, %v1058
      %v1253 = vmul.f32 %v1163, %v1058
      %v1254 = vmul.f32 %v1166, %v1058
      %v1255 = vmul.f32 %v1169, %v1058
      %v1256 = vmul.f32 %v1172, %v1058
      %v1257 = vmul.f32 %v1175, %v1058
      %v1258 = vmul.f32 %v1178, %v1058
      %v1259 = vmul.f32 %v1181, %v1058
      %v1260 = vmul.f32 %v1184, %v1058
      %v1261 = vmul.f32 %v1187, %v1058
      %v1262 = vmul.f32 %v1190, %v1058
      %v1263 = vmul.f32 %v1193, %v1058
      %v1264 = vmul.f32 %v1196, %v1058
      %v1265 = vmul.f32 %v1199, %v1058
      %v1266 = vmul.f32 %v1202, %v1058
      %v1267 = vmul.f32 %v1205, %v1058
      %v1268 = vmul.f32 %v1208, %v1058
      %v1269 = vmul.f32 %v1211, %v1058
      %v1270 = vmul.f32 %v1214, %v1058
      %v1271 = vmul.f32 %v1217, %v1058
      %v1272 = vmul.f32 %v1220, %v1058
      %v1273 = vmul.f32 %v1223, %v1058
      %v1274 = vmul.f32 %v1226, %v1058
      %v1275 = vmul.f32 %v1229, %v1058
      %v1276 = vmul.f32 %v1232, %v1058
      %v1277 = vmul.f32 %v1235, %v1058
      %v1278 = vmul.f32 %v1238, %v1058
      %v1279 = vmul.f32 %v1241, %v1058
      %v1280 = vmul.f32 %v1244, %v1058
      %v1281 = vmul.f32 %v1247, %v1058
      %v1282 = vmul.f32 %v1250, %v1058
      %v1283 = vadd.f32 %v1251, 1e-05
      %v1284 = vadd.f32 %v1252, 1e-05
      %v1285 = vadd.f32 %v1253, 1e-05
      %v1286 = vadd.f32 %v1254, 1e-05
      %v1287 = vadd.f32 %v1255, 1e-05
      %v1288 = vadd.f32 %v1256, 1e-05
      %v1289 = vadd.f32 %v1257, 1e-05
      %v1290 = vadd.f32 %v1258, 1e-05
      %v1291 = vadd.f32 %v1259, 1e-05
      %v1292 = vadd.f32 %v1260, 1e-05
      %v1293 = vadd.f32 %v1261, 1e-05
      %v1294 = vadd.f32 %v1262, 1e-05
      %v1295 = vadd.f32 %v1263, 1e-05
      %v1296 = vadd.f32 %v1264, 1e-05
      %v1297 = vadd.f32 %v1265, 1e-05
      %v1298 = vadd.f32 %v1266, 1e-05
      %v1299 = vadd.f32 %v1267, 1e-05
      %v1300 = vadd.f32 %v1268, 1e-05
      %v1301 = vadd.f32 %v1269, 1e-05
      %v1302 = vadd.f32 %v1270, 1e-05
      %v1303 = vadd.f32 %v1271, 1e-05
      %v1304 = vadd.f32 %v1272, 1e-05
      %v1305 = vadd.f32 %v1273, 1e-05
      %v1306 = vadd.f32 %v1274, 1e-05
      %v1307 = vadd.f32 %v1275, 1e-05
      %v1308 = vadd.f32 %v1276, 1e-05
      %v1309 = vadd.f32 %v1277, 1e-05
      %v1310 = vadd.f32 %v1278, 1e-05
      %v1311 = vadd.f32 %v1279, 1e-05
      %v1312 = vadd.f32 %v1280, 1e-05
      %v1313 = vadd.f32 %v1281, 1e-05
      %v1314 = vadd.f32 %v1282, 1e-05
      %v1315 = vrsqrt.pop %v1283
      %v1316 = vrsqrt.pop %v1284
      %v1317 = vrsqrt.pop %v1285
      %v1318 = vrsqrt.pop %v1286
      %v1319 = vrsqrt.pop %v1287
      %v1320 = vrsqrt.pop %v1288
      %v1321 = vrsqrt.pop %v1289
      %v1322 = vrsqrt.pop %v1290
      %v1323 = vrsqrt.pop %v1291
      %v1324 = vrsqrt.pop %v1292
      %v1325 = vrsqrt.pop %v1293
      %v1326 = vrsqrt.pop %v1294
      %v1327 = vrsqrt.pop %v1295
      %v1328 = vrsqrt.pop %v1296
      %v1329 = vrsqrt.pop %v1297
      %v1330 = vrsqrt.pop %v1298
      %v1331 = vrsqrt.pop %v1299
      %v1332 = vrsqrt.pop %v1300
      %v1333 = vrsqrt.pop %v1301
      %v1334 = vrsqrt.pop %v1302
      %v1335 = vrsqrt.pop %v1303
      %v1336 = vrsqrt.pop %v1304
      %v1337 = vrsqrt.pop %v1305
      %v1338 = vrsqrt.pop %v1306
      %v1339 = vrsqrt.pop %v1307
      %v1340 = vrsqrt.pop %v1308
      %v1341 = vrsqrt.pop %v1309
      %v1342 = vrsqrt.pop %v1310
      %v1343 = vrsqrt.pop %v1311
      %v1344 = vrsqrt.pop %v1312
      %v1345 = vrsqrt.pop %v1313
      %v1346 = vrsqrt.pop %v1314
      %v1347 = vmul.f32 %v1091, %v1315
      %v1348 = vmul.f32 %v1092, %v1316
      %v1349 = vmul.f32 %v1093, %v1317
      %v1350 = vmul.f32 %v1094, %v1318
      %v1351 = vmul.f32 %v1095, %v1319
      %v1352 = vmul.f32 %v1096, %v1320
      %v1353 = vmul.f32 %v1097, %v1321
      %v1354 = vmul.f32 %v1098, %v1322
      %v1355 = vmul.f32 %v1099, %v1323
      %v1356 = vmul.f32 %v1100, %v1324
      %v1357 = vmul.f32 %v1101, %v1325
      %v1358 = vmul.f32 %v1102, %v1326
      %v1359 = vmul.f32 %v1103, %v1327
      %v1360 = vmul.f32 %v1104, %v1328
      %v1361 = vmul.f32 %v1105, %v1329
      %v1362 = vmul.f32 %v1106, %v1330
      %v1363 = vmul.f32 %v1107, %v1331
      %v1364 = vmul.f32 %v1108, %v1332
      %v1365 = vmul.f32 %v1109, %v1333
      %v1366 = vmul.f32 %v1110, %v1334
      %v1367 = vmul.f32 %v1111, %v1335
      %v1368 = vmul.f32 %v1112, %v1336
      %v1369 = vmul.f32 %v1113, %v1337
      %v1370 = vmul.f32 %v1114, %v1338
      %v1371 = vmul.f32 %v1115, %v1339
      %v1372 = vmul.f32 %v1116, %v1340
      %v1373 = vmul.f32 %v1117, %v1341
      %v1374 = vmul.f32 %v1118, %v1342
      %v1375 = vmul.f32 %v1119, %v1343
      %v1376 = vmul.f32 %v1120, %v1344
      %v1377 = vmul.f32 %v1121, %v1345
      %v1378 = vmul.f32 %v1122, %v1346
      %v1379 = vld [vmem:[%s3] sm:$0x1]
      %v1381 = vlaneseq
      %v1382 = vshrl.u32 %v1381, 7
      %v1383 = vsub.s32 0, %v1382
      %v1384 = vrot.slane %v1379, %v1383
      %v1386 = vmul.f32 %v1347, %v1384
      %v1387 = vmul.f32 %v1348, %v1384
      %v1388 = vmul.f32 %v1349, %v1384
      %v1389 = vmul.f32 %v1350, %v1384
      %v1390 = vmul.f32 %v1351, %v1384
      %v1391 = vmul.f32 %v1352, %v1384
      %v1392 = vmul.f32 %v1353, %v1384
      %v1393 = vmul.f32 %v1354, %v1384
      %v1394 = vmul.f32 %v1355, %v1384
      %v1395 = vmul.f32 %v1356, %v1384
      %v1396 = vmul.f32 %v1357, %v1384
      %v1397 = vmul.f32 %v1358, %v1384
      %v1398 = vmul.f32 %v1359, %v1384
      %v1399 = vmul.f32 %v1360, %v1384
      %v1400 = vmul.f32 %v1361, %v1384
      %v1401 = vmul.f32 %v1362, %v1384
      %v1402 = vmul.f32 %v1363, %v1384
      %v1403 = vmul.f32 %v1364, %v1384
      %v1404 = vmul.f32 %v1365, %v1384
      %v1405 = vmul.f32 %v1366, %v1384
      %v1406 = vmul.f32 %v1367, %v1384
      %v1407 = vmul.f32 %v1368, %v1384
      %v1408 = vmul.f32 %v1369, %v1384
      %v1409 = vmul.f32 %v1370, %v1384
      %v1410 = vmul.f32 %v1371, %v1384
      %v1411 = vmul.f32 %v1372, %v1384
      %v1412 = vmul.f32 %v1373, %v1384
      %v1413 = vmul.f32 %v1374, %v1384
      %v1414 = vmul.f32 %v1375, %v1384
      %v1415 = vmul.f32 %v1376, %v1384
      %v1416 = vmul.f32 %v1377, %v1384
      %v1417 = vmul.f32 %v1378, %v1384
      %v1418 = vld [vmem:[%s4] sm:$0x1]
      %v1420 = vlaneseq
      %v1421 = vshrl.u32 %v1420, 7
      %v1422 = vsub.s32 0, %v1421
      %v1423 = vrot.slane %v1418, %v1422
      %v1425 = vadd.f32 %v1386, %v1423
      %v1426 = vadd.f32 %v1387, %v1423
      %v1427 = vadd.f32 %v1388, %v1423
      %v1428 = vadd.f32 %v1389, %v1423
      %v1429 = vadd.f32 %v1390, %v1423
      %v1430 = vadd.f32 %v1391, %v1423
      %v1431 = vadd.f32 %v1392, %v1423
      %v1432 = vadd.f32 %v1393, %v1423
      %v1433 = vadd.f32 %v1394, %v1423
      %v1434 = vadd.f32 %v1395, %v1423
      %v1435 = vadd.f32 %v1396, %v1423
      %v1436 = vadd.f32 %v1397, %v1423
      %v1437 = vadd.f32 %v1398, %v1423
      %v1438 = vadd.f32 %v1399, %v1423
      %v1439 = vadd.f32 %v1400, %v1423
      %v1440 = vadd.f32 %v1401, %v1423
      %v1441 = vadd.f32 %v1402, %v1423
      %v1442 = vadd.f32 %v1403, %v1423
      %v1443 = vadd.f32 %v1404, %v1423
      %v1444 = vadd.f32 %v1405, %v1423
      %v1445 = vadd.f32 %v1406, %v1423
      %v1446 = vadd.f32 %v1407, %v1423
      %v1447 = vadd.f32 %v1408, %v1423
      %v1448 = vadd.f32 %v1409, %v1423
      %v1449 = vadd.f32 %v1410, %v1423
      %v1450 = vadd.f32 %v1411, %v1423
      %v1451 = vadd.f32 %v1412, %v1423
      %v1452 = vadd.f32 %v1413, %v1423
      %v1453 = vadd.f32 %v1414, %v1423
      %v1454 = vadd.f32 %v1415, %v1423
      %v1455 = vadd.f32 %v1416, %v1423
      %v1456 = vadd.f32 %v1417, %v1423
      %v1457 = vld [vmem:[%s5] sm:$0xff]
      %v1458 = vld [vmem:[%s5 + $0x8] sm:$0xff]
      %v1459 = vld [vmem:[%s5 + $0x10] sm:$0xff]
      %v1460 = vld [vmem:[%s5 + $0x18] sm:$0xff]
      %v1461 = vld [vmem:[%s6] sm:$0x1]
      %v1463 = vlaneseq
      %v1464 = vshrl.u32 %v1463, 7
      %v1465 = vsub.s32 0, %v1464
      %v1466 = vrot.slane %v1461, %v1465
      %v1469 = vsel %vm961, %v1425, 0
      %v1472 = vsel %vm961, %v1426, 0
      %v1475 = vsel %vm961, %v1427, 0
      %v1478 = vsel %vm961, %v1428, 0
      %v1481 = vsel %vm961, %v1429, 0
      %v1484 = vsel %vm961, %v1430, 0
      %v1487 = vsel %vm961, %v1431, 0
      %v1490 = vsel %vm961, %v1432, 0
      %v1493 = vsel %vm961, %v1433, 0
      %v1496 = vsel %vm961, %v1434, 0
      %v1499 = vsel %vm961, %v1435, 0
      %v1502 = vsel %vm961, %v1436, 0
      %v1505 = vsel %vm961, %v1437, 0
      %v1508 = vsel %vm961, %v1438, 0
      %v1511 = vsel %vm961, %v1439, 0
      %v1514 = vsel %vm961, %v1440, 0
      %v1517 = vsel %vm961, %v1441, 0
      %v1520 = vsel %vm961, %v1442, 0
      %v1523 = vsel %vm961, %v1443, 0
      %v1526 = vsel %vm961, %v1444, 0
      %v1529 = vsel %vm961, %v1445, 0
      %v1532 = vsel %vm961, %v1446, 0
      %v1535 = vsel %vm961, %v1447, 0
      %v1538 = vsel %vm961, %v1448, 0
      %v1541 = vsel %vm961, %v1449, 0
      %v1544 = vsel %vm961, %v1450, 0
      %v1547 = vsel %vm961, %v1451, 0
      %v1550 = vsel %vm961, %v1452, 0
      %v1553 = vsel %vm961, %v1453, 0
      %v1556 = vsel %vm961, %v1454, 0
      %v1559 = vsel %vm961, %v1455, 0
      %v1562 = vsel %vm961, %v1456, 0
      %1564 = vmatprep.subr.mxu0 0.0
      %1565 = vmatpush1.msra.mxu0 %v1457
      %1566 = vmatprep.subr.mxu0 0.0
      %1567 = vmatpush1.msra.mxu0 %v1458
      %1568 = vmatprep.subr.mxu0 0.0
      %1569 = vmatpush1.msra.mxu0 %v1459
      %1570 = vmatprep.subr.mxu0 0.0
      %1571 = vmatpush1.msra.mxu0 %v1460
      %1572 = vmatprep.subr.mxu0 0.0
      %1573 = vmatpush1.msra.mxu0 0.0
      %1574 = vmatprep.subr.mxu0 0.0
      %1575 = vmatpush1.msra.mxu0 0.0
      %1576 = vmatprep.subr.mxu0 0.0
      %1577 = vmatpush1.msra.mxu0 0.0
      %1578 = vmatprep.subr.mxu0 0.0
      %1579 = vmatpush1.msra.mxu0 0.0
      %1580 = vmatprep.subr.mxu0 0.0
      %1581 = vmatpush1.msra.mxu0 0.0
      %1582 = vmatprep.subr.mxu0 0.0
      %1583 = vmatpush1.msra.mxu0 0.0
      %1584 = vmatprep.subr.mxu0 0.0
      %1585 = vmatpush1.msra.mxu0 0.0
      %1586 = vmatprep.subr.mxu0 0.0
      %1587 = vmatpush1.msra.mxu0 0.0
      %1588 = vmatprep.subr.mxu0 0.0
      %1589 = vmatpush1.msra.mxu0 0.0
      %1590 = vmatprep.subr.mxu0 0.0
      %1591 = vmatpush1.msra.mxu0 0.0
      %1592 = vmatprep.subr.mxu0 0.0
      %1593 = vmatpush1.msra.mxu0 0.0
      %1594 = vmatprep.subr.mxu0 0.0
      %1595 = vmatpush1.msra.mxu0 0.0
      %1596 = vmatprep.subr.mxu0 0.0
      %1597 = vmatpush1.msra.mxu0 0.0
      %1598 = vmatprep.subr.mxu0 0.0
      %1599 = vmatpush1.msra.mxu0 0.0
      %1600 = vmatprep.subr.mxu0 0.0
      %1601 = vmatpush1.msra.mxu0 0.0
      %1602 = vmatprep.subr.mxu0 0.0
      %1603 = vmatpush1.msra.mxu0 0.0
      %1604 = vmatprep.subr.mxu0 0.0
      %1605 = vmatpush1.msra.mxu0 0.0
      %1606 = vmatprep.subr.mxu0 0.0
      %1607 = vmatpush1.msra.mxu0 0.0
      %1608 = vmatprep.subr.mxu0 0.0
      %1609 = vmatpush1.msra.mxu0 0.0
      %1610 = vmatprep.subr.mxu0 0.0
      %1611 = vmatpush1.msra.mxu0 0.0
      %1612 = vmatprep.subr.mxu0 0.0
      %1613 = vmatpush1.msra.mxu0 0.0
      %1614 = vmatprep.subr.mxu0 0.0
      %1615 = vmatpush1.msra.mxu0 0.0
      %1616 = vmatprep.subr.mxu0 0.0
      %1617 = vmatpush1.msra.mxu0 0.0
      %1618 = vmatprep.subr.mxu0 0.0
      %1619 = vmatpush1.msra.mxu0 0.0
      %1620 = vmatprep.subr.mxu0 0.0
      %1621 = vmatpush1.msra.mxu0 0.0
      %1622 = vmatprep.subr.mxu0 0.0
      %1623 = vmatpush1.msra.mxu0 0.0
      %1624 = vmatprep.subr.mxu0 0.0
      %1625 = vmatpush1.msra.mxu0 0.0
      %1626 = vmatprep.subr.mxu0 0.0
      %1627 = vmatpush1.msra.mxu0 0.0
      %1628 = vmatprep.mubr.f32.mxu0 0.0
      %1629 = vmatmul.mubr.f32.gmra.mrb[0].mxu0 %v1469
      %v1630 = vpop.f32.mrb[0].mxu0
      %v1631 = vadd.f32 %v1466, %v1630
      %v1632 = vpop.f32.mrb[0].mxu0
      %1633 = vmatprep.mubr.f32.mxu0 0.0
      %1634 = vmatmul.mubr.f32.gmra.mrb[0].mxu0 %v1472
      %v1635 = vpop.f32.mrb[0].mxu0
      %v1636 = vadd.f32 %v1466, %v1635
      %v1637 = vpop.f32.mrb[0].mxu0
      %1638 = vmatprep.mubr.f32.mxu0 0.0
      %1639 = vmatmul.mubr.f32.gmra.mrb[0].mxu0 %v1475
      %v1640 = vpop.f32.mrb[0].mxu0
      %v1641 = vadd.f32 %v1466, %v1640
      %v1642 = vpop.f32.mrb[0].mxu0
      %1643 = vmatprep.mubr.f32.mxu0 0.0
      %1644 = vmatmul.mubr.f32.gmra.mrb[0].mxu0 %v1478
      %v1645 = vpop.f32.mrb[0].mxu0
      %v1646 = vadd.f32 %v1466, %v1645
      %v1647 = vpop.f32.mrb[0].mxu0
      %1648 = vmatprep.mubr.f32.mxu0 0.0
      %1649 = vmatmul.mubr.f32.gmra.mrb[0].mxu0 %v1481
      %v1650 = vpop.f32.mrb[0].mxu0
      %v1651 = vadd.f32 %v1466, %v1650
      %v1652 = vpop.f32.mrb[0].mxu0
      %1653 = vmatprep.mubr.f32.mxu0 0.0
      %1654 = vmatmul.mubr.f32.gmra.mrb[0].mxu0 %v1484
      %v1655 = vpop.f32.mrb[0].mxu0
      %v1656 = vadd.f32 %v1466, %v1655
      %v1657 = vpop.f32.mrb[0].mxu0
      %1658 = vmatprep.mubr.f32.mxu0 0.0
      %1659 = vmatmul.mubr.f32.gmra.mrb[0].mxu0 %v1487
      %v1660 = vpop.f32.mrb[0].mxu0
      %v1661 = vadd.f32 %v1466, %v1660
      %v1662 = vpop.f32.mrb[0].mxu0
      %1663 = vmatprep.mubr.f32.mxu0 0.0
      %1664 = vmatmul.mubr.f32.gmra.mrb[0].mxu0 %v1490
      %v1665 = vpop.f32.mrb[0].mxu0
      %v1666 = vadd.f32 %v1466, %v1665
      %v1667 = vpop.f32.mrb[0].mxu0
      %1668 = vmatprep.mubr.f32.mxu0 0.0
      %1669 = vmatmul.mubr.f32.gmra.mrb[0].mxu0 %v1493
      %v1670 = vpop.f32.mrb[0].mxu0
      %v1671 = vadd.f32 %v1466, %v1670
      %v1672 = vpop.f32.mrb[0].mxu0
      %1673 = vmatprep.mubr.f32.mxu0 0.0
      %1674 = vmatmul.mubr.f32.gmra.mrb[0].mxu0 %v1496
      %v1675 = vpop.f32.mrb[0].mxu0
      %v1676 = vadd.f32 %v1466, %v1675
      %v1677 = vpop.f32.mrb[0].mxu0
      %1678 = vmatprep.mubr.f32.mxu0 0.0
      %1679 = vmatmul.mubr.f32.gmra.mrb[0].mxu0 %v1499
      %v1680 = vpop.f32.mrb[0].mxu0
      %v1681 = vadd.f32 %v1466, %v1680
      %v1682 = vpop.f32.mrb[0].mxu0
      %1683 = vmatprep.mubr.f32.mxu0 0.0
      %1684 = vmatmul.mubr.f32.gmra.mrb[0].mxu0 %v1502
      %v1685 = vpop.f32.mrb[0].mxu0
      %v1686 = vadd.f32 %v1466, %v1685
      %v1687 = vpop.f32.mrb[0].mxu0
      %1688 = vmatprep.mubr.f32.mxu0 0.0
      %1689 = vmatmul.mubr.f32.gmra.mrb[0].mxu0 %v1505
      %v1690 = vpop.f32.mrb[0].mxu0
      %v1691 = vadd.f32 %v1466, %v1690
      %v1692 = vpop.f32.mrb[0].mxu0
      %1693 = vmatprep.mubr.f32.mxu0 0.0
      %1694 = vmatmul.mubr.f32.gmra.mrb[0].mxu0 %v1508
      %v1695 = vpop.f32.mrb[0].mxu0
      %v1696 = vadd.f32 %v1466, %v1695
      %v1697 = vpop.f32.mrb[0].mxu0
      %1698 = vmatprep.mubr.f32.mxu0 0.0
      %1699 = vmatmul.mubr.f32.gmra.mrb[0].mxu0 %v1511
      %v1700 = vpop.f32.mrb[0].mxu0
      %v1701 = vadd.f32 %v1466, %v1700
      %v1702 = vpop.f32.mrb[0].mxu0
      %1703 = vmatprep.mubr.f32.mxu0 0.0
      %1704 = vmatmul.mubr.f32.gmra.mrb[0].mxu0 %v1514
      %v1705 = vpop.f32.mrb[0].mxu0
      %v1706 = vadd.f32 %v1466, %v1705
      %v1707 = vpop.f32.mrb[0].mxu0
      %1708 = vmatprep.mubr.f32.mxu0 0.0
      %1709 = vmatmul.mubr.f32.gmra.mrb[0].mxu0 %v1517
      %v1710 = vpop.f32.mrb[0].mxu0
      %v1711 = vadd.f32 %v1466, %v1710
      %v1712 = vpop.f32.mrb[0].mxu0
      %1713 = vmatprep.mubr.f32.mxu0 0.0
      %1714 = vmatmul.mubr.f32.gmra.mrb[0].mxu0 %v1520
      %v1715 = vpop.f32.mrb[0].mxu0
      %v1716 = vadd.f32 %v1466, %v1715
      %v1717 = vpop.f32.mrb[0].mxu0
      %1718 = vmatprep.mubr.f32.mxu0 0.0
      %1719 = vmatmul.mubr.f32.gmra.mrb[0].mxu0 %v1523
      %v1720 = vpop.f32.mrb[0].mxu0
      %v1721 = vadd.f32 %v1466, %v1720
      %v1722 = vpop.f32.mrb[0].mxu0
      %1723 = vmatprep.mubr.f32.mxu0 0.0
      %1724 = vmatmul.mubr.f32.gmra.mrb[0].mxu0 %v1526
      %v1725 = vpop.f32.mrb[0].mxu0
      %v1726 = vadd.f32 %v1466, %v1725
      %v1727 = vpop.f32.mrb[0].mxu0
      %1728 = vmatprep.mubr.f32.mxu0 0.0
      %1729 = vmatmul.mubr.f32.gmra.mrb[0].mxu0 %v1529
      %v1730 = vpop.f32.mrb[0].mxu0
      %v1731 = vadd.f32 %v1466, %v1730
      %v1732 = vpop.f32.mrb[0].mxu0
      %1733 = vmatprep.mubr.f32.mxu0 0.0
      %1734 = vmatmul.mubr.f32.gmra.mrb[0].mxu0 %v1532
      %v1735 = vpop.f32.mrb[0].mxu0
      %v1736 = vadd.f32 %v1466, %v1735
      %v1737 = vpop.f32.mrb[0].mxu0
      %1738 = vmatprep.mubr.f32.mxu0 0.0
      %1739 = vmatmul.mubr.f32.gmra.mrb[0].mxu0 %v1535
      %v1740 = vpop.f32.mrb[0].mxu0
      %v1741 = vadd.f32 %v1466, %v1740
      %v1742 = vpop.f32.mrb[0].mxu0
      %1743 = vmatprep.mubr.f32.mxu0 0.0
      %1744 = vmatmul.mubr.f32.gmra.mrb[0].mxu0 %v1538
      %v1745 = vpop.f32.mrb[0].mxu0
      %v1746 = vadd.f32 %v1466, %v1745
      %v1747 = vpop.f32.mrb[0].mxu0
      %1748 = vmatprep.mubr.f32.mxu0 0.0
      %1749 = vmatmul.mubr.f32.gmra.mrb[0].mxu0 %v1541
      %v1750 = vpop.f32.mrb[0].mxu0
      %v1751 = vadd.f32 %v1466, %v1750
      %v1752 = vpop.f32.mrb[0].mxu0
      %1753 = vmatprep.mubr.f32.mxu0 0.0
      %1754 = vmatmul.mubr.f32.gmra.mrb[0].mxu0 %v1544
      %v1755 = vpop.f32.mrb[0].mxu0
      %v1756 = vadd.f32 %v1466, %v1755
      %v1757 = vpop.f32.mrb[0].mxu0
      %1758 = vmatprep.mubr.f32.mxu0 0.0
      %1759 = vmatmul.mubr.f32.gmra.mrb[0].mxu0 %v1547
      %v1760 = vpop.f32.mrb[0].mxu0
      %v1761 = vadd.f32 %v1466, %v1760
      %v1762 = vpop.f32.mrb[0].mxu0
      %1763 = vmatprep.mubr.f32.mxu0 0.0
      %1764 = vmatmul.mubr.f32.gmra.mrb[0].mxu0 %v1550
      %v1765 = vpop.f32.mrb[0].mxu0
      %v1766 = vadd.f32 %v1466, %v1765
      %v1767 = vpop.f32.mrb[0].mxu0
      %1768 = vmatprep.mubr.f32.mxu0 0.0
      %1769 = vmatmul.mubr.f32.gmra.mrb[0].mxu0 %v1553
      %v1770 = vpop.f32.mrb[0].mxu0
      %v1771 = vadd.f32 %v1466, %v1770
      %v1772 = vpop.f32.mrb[0].mxu0
      %1773 = vmatprep.mubr.f32.mxu0 0.0
      %1774 = vmatmul.mubr.f32.gmra.mrb[0].mxu0 %v1556
      %v1775 = vpop.f32.mrb[0].mxu0
      %v1776 = vadd.f32 %v1466, %v1775
      %v1777 = vpop.f32.mrb[0].mxu0
      %1778 = vmatprep.mubr.f32.mxu0 0.0
      %1779 = vmatmul.mubr.f32.gmra.mrb[0].mxu0 %v1559
      %v1780 = vpop.f32.mrb[0].mxu0
      %v1781 = vadd.f32 %v1466, %v1780
      %v1782 = vpop.f32.mrb[0].mxu0
      %1783 = vmatprep.mubr.f32.mxu0 0.0
      %1784 = vmatmul.mubr.f32.gmra.mrb[0].mxu0 %v1562
      %v1785 = vpop.f32.mrb[0].mxu0
      %v1786 = vadd.f32 %v1466, %v1785
      %v1787 = vpop.f32.mrb[0].mxu0
      %1788 = vdwg.mxu0
      %v1789 = vmax.f32 %v1631, 0.0
      %v1790 = vmax.f32 %v1636, 0.0
      %v1791 = vmax.f32 %v1641, 0.0
      %v1792 = vmax.f32 %v1646, 0.0
      %v1793 = vmax.f32 %v1651, 0.0
      %v1794 = vmax.f32 %v1656, 0.0
      %v1795 = vmax.f32 %v1661, 0.0
      %v1796 = vmax.f32 %v1666, 0.0
      %v1797 = vmax.f32 %v1671, 0.0
      %v1798 = vmax.f32 %v1676, 0.0
      %v1799 = vmax.f32 %v1681, 0.0
      %v1800 = vmax.f32 %v1686, 0.0
      %v1801 = vmax.f32 %v1691, 0.0
      %v1802 = vmax.f32 %v1696, 0.0
      %v1803 = vmax.f32 %v1701, 0.0
      %v1804 = vmax.f32 %v1706, 0.0
      %v1805 = vmax.f32 %v1711, 0.0
      %v1806 = vmax.f32 %v1716, 0.0
      %v1807 = vmax.f32 %v1721, 0.0
      %v1808 = vmax.f32 %v1726, 0.0
      %v1809 = vmax.f32 %v1731, 0.0
      %v1810 = vmax.f32 %v1736, 0.0
      %v1811 = vmax.f32 %v1741, 0.0
      %v1812 = vmax.f32 %v1746, 0.0
      %v1813 = vmax.f32 %v1751, 0.0
      %v1814 = vmax.f32 %v1756, 0.0
      %v1815 = vmax.f32 %v1761, 0.0
      %v1816 = vmax.f32 %v1766, 0.0
      %v1817 = vmax.f32 %v1771, 0.0
      %v1818 = vmax.f32 %v1776, 0.0
      %v1819 = vmax.f32 %v1781, 0.0
      %v1820 = vmax.f32 %v1786, 0.0
      %v1821 = vld [vmem:[%s7] sm:$0x1]
      %v1823 = vlaneseq
      %v1824 = vshrl.u32 %v1823, 7
      %v1825 = vsub.s32 0, %v1824
      %v1826 = vrot.slane %v1821, %v1825
      %v1828 = vmul.f32 %v1789, %v1826
      %v1829 = vmul.f32 %v1790, %v1826
      %v1830 = vmul.f32 %v1791, %v1826
      %v1831 = vmul.f32 %v1792, %v1826
      %v1832 = vmul.f32 %v1793, %v1826
      %v1833 = vmul.f32 %v1794, %v1826
      %v1834 = vmul.f32 %v1795, %v1826
      %v1835 = vmul.f32 %v1796, %v1826
      %v1836 = vmul.f32 %v1797, %v1826
      %v1837 = vmul.f32 %v1798, %v1826
      %v1838 = vmul.f32 %v1799, %v1826
      %v1839 = vmul.f32 %v1800, %v1826
      %v1840 = vmul.f32 %v1801, %v1826
      %v1841 = vmul.f32 %v1802, %v1826
      %v1842 = vmul.f32 %v1803, %v1826
      %v1843 = vmul.f32 %v1804, %v1826
      %v1844 = vmul.f32 %v1805, %v1826
      %v1845 = vmul.f32 %v1806, %v1826
      %v1846 = vmul.f32 %v1807, %v1826
      %v1847 = vmul.f32 %v1808, %v1826
      %v1848 = vmul.f32 %v1809, %v1826
      %v1849 = vmul.f32 %v1810, %v1826
      %v1850 = vmul.f32 %v1811, %v1826
      %v1851 = vmul.f32 %v1812, %v1826
      %v1852 = vmul.f32 %v1813, %v1826
      %v1853 = vmul.f32 %v1814, %v1826
      %v1854 = vmul.f32 %v1815, %v1826
      %v1855 = vmul.f32 %v1816, %v1826
      %v1856 = vmul.f32 %v1817, %v1826
      %v1857 = vmul.f32 %v1818, %v1826
      %v1858 = vmul.f32 %v1819, %v1826
      %v1859 = vmul.f32 %v1820, %v1826
      %v1860 = vsel %vm687, %v1828, 0.0
      %1861 = vadd.xlane.f32.xlu0 %v1860
      %v1862 = vpop.xlane.xlu0 %1861
      %v1863 = vsel %vm687, %v1829, 0.0
      %1864 = vadd.xlane.f32.xlu0 %v1863
      %v1865 = vpop.xlane.xlu0 %1864
      %v1866 = vsel %vm687, %v1830, 0.0
      %1867 = vadd.xlane.f32.xlu0 %v1866
      %v1868 = vpop.xlane.xlu0 %1867
      %v1869 = vsel %vm687, %v1831, 0.0
      %1870 = vadd.xlane.f32.xlu0 %v1869
      %v1871 = vpop.xlane.xlu0 %1870
      %v1872 = vsel %vm687, %v1832, 0.0
      %1873 = vadd.xlane.f32.xlu0 %v1872
      %v1874 = vpop.xlane.xlu0 %1873
      %v1875 = vsel %vm687, %v1833, 0.0
      %1876 = vadd.xlane.f32.xlu0 %v1875
      %v1877 = vpop.xlane.xlu0 %1876
      %v1878 = vsel %vm687, %v1834, 0.0
      %1879 = vadd.xlane.f32.xlu0 %v1878
      %v1880 = vpop.xlane.xlu0 %1879
      %v1881 = vsel %vm687, %v1835, 0.0
      %1882 = vadd.xlane.f32.xlu0 %v1881
      %v1883 = vpop.xlane.xlu0 %1882
      %v1884 = vsel %vm687, %v1836, 0.0
      %1885 = vadd.xlane.f32.xlu0 %v1884
      %v1886 = vpop.xlane.xlu0 %1885
      %v1887 = vsel %vm687, %v1837, 0.0
      %1888 = vadd.xlane.f32.xlu0 %v1887
      %v1889 = vpop.xlane.xlu0 %1888
      %v1890 = vsel %vm687, %v1838, 0.0
      %1891 = vadd.xlane.f32.xlu0 %v1890
      %v1892 = vpop.xlane.xlu0 %1891
      %v1893 = vsel %vm687, %v1839, 0.0
      %1894 = vadd.xlane.f32.xlu0 %v1893
      %v1895 = vpop.xlane.xlu0 %1894
      %v1896 = vsel %vm687, %v1840, 0.0
      %1897 = vadd.xlane.f32.xlu0 %v1896
      %v1898 = vpop.xlane.xlu0 %1897
      %v1899 = vsel %vm687, %v1841, 0.0
      %1900 = vadd.xlane.f32.xlu0 %v1899
      %v1901 = vpop.xlane.xlu0 %1900
      %v1902 = vsel %vm687, %v1842, 0.0
      %1903 = vadd.xlane.f32.xlu0 %v1902
      %v1904 = vpop.xlane.xlu0 %1903
      %v1905 = vsel %vm687, %v1843, 0.0
      %1906 = vadd.xlane.f32.xlu0 %v1905
      %v1907 = vpop.xlane.xlu0 %1906
      %v1908 = vsel %vm687, %v1844, 0.0
      %1909 = vadd.xlane.f32.xlu0 %v1908
      %v1910 = vpop.xlane.xlu0 %1909
      %v1911 = vsel %vm687, %v1845, 0.0
      %1912 = vadd.xlane.f32.xlu0 %v1911
      %v1913 = vpop.xlane.xlu0 %1912
      %v1914 = vsel %vm687, %v1846, 0.0
      %1915 = vadd.xlane.f32.xlu0 %v1914
      %v1916 = vpop.xlane.xlu0 %1915
      %v1917 = vsel %vm687, %v1847, 0.0
      %1918 = vadd.xlane.f32.xlu0 %v1917
      %v1919 = vpop.xlane.xlu0 %1918
      %v1920 = vsel %vm687, %v1848, 0.0
      %1921 = vadd.xlane.f32.xlu0 %v1920
      %v1922 = vpop.xlane.xlu0 %1921
      %v1923 = vsel %vm687, %v1849, 0.0
      %1924 = vadd.xlane.f32.xlu0 %v1923
      %v1925 = vpop.xlane.xlu0 %1924
      %v1926 = vsel %vm687, %v1850, 0.0
      %1927 = vadd.xlane.f32.xlu0 %v1926
      %v1928 = vpop.xlane.xlu0 %1927
      %v1929 = vsel %vm687, %v1851, 0.0
      %1930 = vadd.xlane.f32.xlu0 %v1929
      %v1931 = vpop.xlane.xlu0 %1930
      %v1932 = vsel %vm687, %v1852, 0.0
      %1933 = vadd.xlane.f32.xlu0 %v1932
      %v1934 = vpop.xlane.xlu0 %1933
      %v1935 = vsel %vm687, %v1853, 0.0
      %1936 = vadd.xlane.f32.xlu0 %v1935
      %v1937 = vpop.xlane.xlu0 %1936
      %v1938 = vsel %vm687, %v1854, 0.0
      %1939 = vadd.xlane.f32.xlu0 %v1938
      %v1940 = vpop.xlane.xlu0 %1939
      %v1941 = vsel %vm687, %v1855, 0.0
      %1942 = vadd.xlane.f32.xlu0 %v1941
      %v1943 = vpop.xlane.xlu0 %1942
      %v1944 = vsel %vm687, %v1856, 0.0
      %1945 = vadd.xlane.f32.xlu0 %v1944
      %v1946 = vpop.xlane.xlu0 %1945
      %v1947 = vsel %vm687, %v1857, 0.0
      %1948 = vadd.xlane.f32.xlu0 %v1947
      %v1949 = vpop.xlane.xlu0 %1948
      %v1950 = vsel %vm687, %v1858, 0.0
      %1951 = vadd.xlane.f32.xlu0 %v1950
      %v1952 = vpop.xlane.xlu0 %1951
      %v1953 = vsel %vm687, %v1859, 0.0
      %1954 = vadd.xlane.f32.xlu0 %v1953
      %v1955 = vpop.xlane.xlu0 %1954
      %v1956 = vld [vmem:[#allocation6] sm:$0x1]
      %v1958 = vlaneseq
      %v1959 = vshrl.u32 %v1958, 7
      %v1960 = vsub.s32 0, %v1959
      %v1961 = vrot.slane %v1956, %v1960
      %v1963 = vadd.f32 %v1862, %v1961
      %v1964 = vadd.f32 %v1865, %v1961
      %v1965 = vadd.f32 %v1868, %v1961
      %v1966 = vadd.f32 %v1871, %v1961
      %v1967 = vadd.f32 %v1874, %v1961
      %v1968 = vadd.f32 %v1877, %v1961
      %v1969 = vadd.f32 %v1880, %v1961
      %v1970 = vadd.f32 %v1883, %v1961
      %v1971 = vadd.f32 %v1886, %v1961
      %v1972 = vadd.f32 %v1889, %v1961
      %v1973 = vadd.f32 %v1892, %v1961
      %v1974 = vadd.f32 %v1895, %v1961
      %v1975 = vadd.f32 %v1898, %v1961
      %v1976 = vadd.f32 %v1901, %v1961
      %v1977 = vadd.f32 %v1904, %v1961
      %v1978 = vadd.f32 %v1907, %v1961
      %v1979 = vadd.f32 %v1910, %v1961
      %v1980 = vadd.f32 %v1913, %v1961
      %v1981 = vadd.f32 %v1916, %v1961
      %v1982 = vadd.f32 %v1919, %v1961
      %v1983 = vadd.f32 %v1922, %v1961
      %v1984 = vadd.f32 %v1925, %v1961
      %v1985 = vadd.f32 %v1928, %v1961
      %v1986 = vadd.f32 %v1931, %v1961
      %v1987 = vadd.f32 %v1934, %v1961
      %v1988 = vadd.f32 %v1937, %v1961
      %v1989 = vadd.f32 %v1940, %v1961
      %v1990 = vadd.f32 %v1943, %v1961
      %v1991 = vadd.f32 %v1946, %v1961
      %v1992 = vadd.f32 %v1949, %v1961
      %v1993 = vadd.f32 %v1952, %v1961
      %v1994 = vadd.f32 %v1955, %v1961
      %v1995 = vld [vmem:[#allocation3] sm:$0x1]
      %v1996 = vsel %vm655, %v1963, 0.0
      %v1997 = vsel %vm656, %v1964, 0.0
      %v1998 = vsel %vm657, %v1965, 0.0
      %v1999 = vsel %vm658, %v1966, 0.0
      %v2000 = vsel %vm659, %v1967, 0.0
      %v2001 = vsel %vm660, %v1968, 0.0
      %v2002 = vsel %vm661, %v1969, 0.0
      %v2003 = vsel %vm662, %v1970, 0.0
      %v2004 = vsel %vm663, %v1971, 0.0
      %v2005 = vsel %vm664, %v1972, 0.0
      %v2006 = vsel %vm665, %v1973, 0.0
      %v2007 = vsel %vm666, %v1974, 0.0
      %v2008 = vsel %vm667, %v1975, 0.0
      %v2009 = vsel %vm668, %v1976, 0.0
      %v2010 = vsel %vm669, %v1977, 0.0
      %v2011 = vsel %vm670, %v1978, 0.0
      %vm2012 = vcmask 7168
      %v2013 = vsel %vm2012, %v1996, 0.0
      %v2014 = vsel %vm2012, %v1997, 0.0
      %v2015 = vadd.f32 %v2013, %v2014
      %v2016 = vsel %vm2012, %v1998, 0.0
      %v2017 = vadd.f32 %v2015, %v2016
      %v2018 = vsel %vm2012, %v1999, 0.0
      %v2019 = vadd.f32 %v2017, %v2018
      %v2020 = vsel %vm2012, %v2000, 0.0
      %v2021 = vadd.f32 %v2019, %v2020
      %v2022 = vsel %vm2012, %v2001, 0.0
      %v2023 = vadd.f32 %v2021, %v2022
      %v2024 = vsel %vm2012, %v2002, 0.0
      %v2025 = vadd.f32 %v2023, %v2024
      %v2026 = vsel %vm2012, %v2003, 0.0
      %v2027 = vadd.f32 %v2025, %v2026
      %v2028 = vsel %vm2012, %v2004, 0.0
      %v2029 = vadd.f32 %v2027, %v2028
      %v2030 = vsel %vm2012, %v2005, 0.0
      %v2031 = vadd.f32 %v2029, %v2030
      %v2032 = vsel %vm2012, %v2006, 0.0
      %v2033 = vadd.f32 %v2031, %v2032
      %v2034 = vsel %vm2012, %v2007, 0.0
      %v2035 = vadd.f32 %v2033, %v2034
      %v2036 = vsel %vm2012, %v2008, 0.0
      %v2037 = vadd.f32 %v2035, %v2036
      %v2038 = vsel %vm2012, %v2009, 0.0
      %v2039 = vadd.f32 %v2037, %v2038
      %v2040 = vsel %vm2012, %v2010, 0.0
      %v2041 = vadd.f32 %v2039, %v2040
      %v2042 = vsel %vm2012, %v2011, 0.0
      %v2043 = vadd.f32 %v2041, %v2042
      %2044 = vadd.xlane.f32.xlu0 %v2043
      %v2045 = vpop.xlane.xlu0 %2044
      %v2046 = vrot.slane %v2045, 4
      %v2047 = vadd.f32 %v2045, %v2046
      %v2048 = vrot.slane %v2047, 2
      %v2049 = vadd.f32 %v2047, %v2048
      %v2050 = vrot.slane %v2049, 1
      %v2051 = vadd.f32 %v2049, %v2050
      %s2052 = vtos %v2051
      %v2053 = vstv %s2052
      %v2054 = vadd.f32 %v1995, %v2053
      %vm2055 = vcmask 0
      %2056 = vst.msk [vmem:[#allocation3] sm:$0x1] %vm2055, %v2054
      %v2057 = vld [vmem:[#allocation4] sm:$0x1]
      %v2058 = vsel %vm655, %v1979, -inf
      %v2059 = vsel %vm656, %v1980, -inf
      %v2060 = vsel %vm657, %v1981, -inf
      %v2061 = vsel %vm658, %v1982, -inf
      %v2062 = vsel %vm659, %v1983, -inf
      %v2063 = vsel %vm660, %v1984, -inf
      %v2064 = vsel %vm661, %v1985, -inf
      %v2065 = vsel %vm662, %v1986, -inf
      %v2066 = vsel %vm663, %v1987, -inf
      %v2067 = vsel %vm664, %v1988, -inf
      %v2068 = vsel %vm665, %v1989, -inf
      %v2069 = vsel %vm666, %v1990, -inf
      %v2070 = vsel %vm667, %v1991, -inf
      %v2071 = vsel %vm668, %v1992, -inf
      %v2072 = vsel %vm669, %v1993, -inf
      %v2073 = vsel %vm670, %v1994, -inf
      %v2074 = vsel %vm2012, %v2058, -inf
      %v2075 = vsel %vm2012, %v2059, -inf
      %v2076 = vsel %vm2012, %v2060, -inf
      %v2077 = vsel %vm2012, %v2061, -inf
      %v2078 = vsel %vm2012, %v2062, -inf
      %v2079 = vmax.f32 %v2074, %v2078
      %v2080 = vsel %vm2012, %v2063, -inf
      %v2081 = vmax.f32 %v2075, %v2080
      %v2082 = vsel %vm2012, %v2064, -inf
      %v2083 = vmax.f32 %v2076, %v2082
      %v2084 = vsel %vm2012, %v2065, -inf
      %v2085 = vmax.f32 %v2077, %v2084
      %v2086 = vsel %vm2012, %v2066, -inf
      %v2087 = vmax.f32 %v2079, %v2086
      %v2088 = vsel %vm2012, %v2067, -inf
      %v2089 = vmax.f32 %v2081, %v2088
      %v2090 = vsel %vm2012, %v2068, -inf
      %v2091 = vmax.f32 %v2083, %v2090
      %v2092 = vsel %vm2012, %v2069, -inf
      %v2093 = vmax.f32 %v2085, %v2092
      %v2094 = vsel %vm2012, %v2070, -inf
      %v2095 = vmax.f32 %v2087, %v2094
      %v2096 = vsel %vm2012, %v2071, -inf
      %v2097 = vmax.f32 %v2089, %v2096
      %v2098 = vsel %vm2012, %v2072, -inf
      %v2099 = vmax.f32 %v2091, %v2098
      %v2100 = vsel %vm2012, %v2073, -inf
      %v2101 = vmax.f32 %v2093, %v2100
      %v2102 = vmax.f32 %v2095, %v2097
      %v2103 = vmax.f32 %v2099, %v2101
      %v2104 = vmax.f32 %v2102, %v2103
      %2105 = vmax.xlane.f32.xlu0 %v2104
      %v2106 = vpop.xlane.xlu0 %2105
      %v2107 = vrot.slane %v2106, 4
      %v2108 = vmax.f32 %v2106, %v2107
      %v2109 = vrot.slane %v2108, 2
      %v2110 = vmax.f32 %v2108, %v2109
      %v2111 = vrot.slane %v2110, 1
      %v2112 = vmax.f32 %v2110, %v2111
      %s2113 = vtos %v2112
      %v2114 = vstv %s2113
      %v2115 = vmax.f32 %v2057, %v2114
      %vm2116 = vcmp.eq.f32.partialorder %v2115, -inf
      %v2117 = vsub.f32 %v2057, %v2115
      %v2118 = vmul.f32 %v2117, 1.442695
      %v2119 = vpow.pop %v2118
      %v2120 = vsel %vm2116, 0.0, %v2119
      %v2121 = vld [vmem:[#allocation5] sm:$0x1]
      %v2122 = vmul.f32 %v2121, %v2120
      %v2124 = vlaneseq
      %v2125 = vshrl.u32 %v2124, 7
      %v2126 = vsub.s32 0, %v2125
      %v2127 = vrot.slane %v2115, %v2126
      %v2129 = vsub.f32 %v1979, %v2127
      %v2130 = vsub.f32 %v1980, %v2127
      %v2131 = vsub.f32 %v1981, %v2127
      %v2132 = vsub.f32 %v1982, %v2127
      %v2133 = vsub.f32 %v1983, %v2127
      %v2134 = vsub.f32 %v1984, %v2127
      %v2135 = vsub.f32 %v1985, %v2127
      %v2136 = vsub.f32 %v1986, %v2127
      %v2137 = vsub.f32 %v1987, %v2127
      %v2138 = vsub.f32 %v1988, %v2127
      %v2139 = vsub.f32 %v1989, %v2127
      %v2140 = vsub.f32 %v1990, %v2127
      %v2141 = vsub.f32 %v1991, %v2127
      %v2142 = vsub.f32 %v1992, %v2127
      %v2143 = vsub.f32 %v1993, %v2127
      %v2144 = vsub.f32 %v1994, %v2127
      %v2145 = vmul.f32 %v2129, 1.442695
      %v2146 = vpow.pop %v2145
      %v2147 = vmul.f32 %v2130, 1.442695
      %v2148 = vpow.pop %v2147
      %v2149 = vmul.f32 %v2131, 1.442695
      %v2150 = vpow.pop %v2149
      %v2151 = vmul.f32 %v2132, 1.442695
      %v2152 = vpow.pop %v2151
      %v2153 = vmul.f32 %v2133, 1.442695
      %v2154 = vpow.pop %v2153
      %v2155 = vmul.f32 %v2134, 1.442695
      %v2156 = vpow.pop %v2155
      %v2157 = vmul.f32 %v2135, 1.442695
      %v2158 = vpow.pop %v2157
      %v2159 = vmul.f32 %v2136, 1.442695
      %v2160 = vpow.pop %v2159
      %v2161 = vmul.f32 %v2137, 1.442695
      %v2162 = vpow.pop %v2161
      %v2163 = vmul.f32 %v2138, 1.442695
      %v2164 = vpow.pop %v2163
      %v2165 = vmul.f32 %v2139, 1.442695
      %v2166 = vpow.pop %v2165
      %v2167 = vmul.f32 %v2140, 1.442695
      %v2168 = vpow.pop %v2167
      %v2169 = vmul.f32 %v2141, 1.442695
      %v2170 = vpow.pop %v2169
      %v2171 = vmul.f32 %v2142, 1.442695
      %v2172 = vpow.pop %v2171
      %v2173 = vmul.f32 %v2143, 1.442695
      %v2174 = vpow.pop %v2173
      %v2175 = vmul.f32 %v2144, 1.442695
      %v2176 = vpow.pop %v2175
      %v2177 = vsel %vm655, %v2146, 0.0
      %v2178 = vsel %vm656, %v2148, 0.0
      %v2179 = vsel %vm657, %v2150, 0.0
      %v2180 = vsel %vm658, %v2152, 0.0
      %v2181 = vsel %vm659, %v2154, 0.0
      %v2182 = vsel %vm660, %v2156, 0.0
      %v2183 = vsel %vm661, %v2158, 0.0
      %v2184 = vsel %vm662, %v2160, 0.0
      %v2185 = vsel %vm663, %v2162, 0.0
      %v2186 = vsel %vm664, %v2164, 0.0
      %v2187 = vsel %vm665, %v2166, 0.0
      %v2188 = vsel %vm666, %v2168, 0.0
      %v2189 = vsel %vm667, %v2170, 0.0
      %v2190 = vsel %vm668, %v2172, 0.0
      %v2191 = vsel %vm669, %v2174, 0.0
      %v2192 = vsel %vm670, %v2176, 0.0
      %v2193 = vsel %vm2012, %v2177, 0.0
      %v2194 = vsel %vm2012, %v2178, 0.0
      %v2195 = vadd.f32 %v2193, %v2194
      %v2196 = vsel %vm2012, %v2179, 0.0
      %v2197 = vadd.f32 %v2195, %v2196
      %v2198 = vsel %vm2012, %v2180, 0.0
      %v2199 = vadd.f32 %v2197, %v2198
      %v2200 = vsel %vm2012, %v2181, 0.0
      %v2201 = vadd.f32 %v2199, %v2200
      %v2202 = vsel %vm2012, %v2182, 0.0
      %v2203 = vadd.f32 %v2201, %v2202
      %v2204 = vsel %vm2012, %v2183, 0.0
      %v2205 = vadd.f32 %v2203, %v2204
      %v2206 = vsel %vm2012, %v2184, 0.0
      %v2207 = vadd.f32 %v2205, %v2206
      %v2208 = vsel %vm2012, %v2185, 0.0
      %v2209 = vadd.f32 %v2207, %v2208
      %v2210 = vsel %vm2012, %v2186, 0.0
      %v2211 = vadd.f32 %v2209, %v2210
      %v2212 = vsel %vm2012, %v2187, 0.0
      %v2213 = vadd.f32 %v2211, %v2212
      %v2214 = vsel %vm2012, %v2188, 0.0
      %v2215 = vadd.f32 %v2213, %v2214
      %v2216 = vsel %vm2012, %v2189, 0.0
      %v2217 = vadd.f32 %v2215, %v2216
      %v2218 = vsel %vm2012, %v2190, 0.0
      %v2219 = vadd.f32 %v2217, %v2218
      %v2220 = vsel %vm2012, %v2191, 0.0
      %v2221 = vadd.f32 %v2219, %v2220
      %v2222 = vsel %vm2012, %v2192, 0.0
      %v2223 = vadd.f32 %v2221, %v2222
      %2224 = vadd.xlane.f32.xlu0 %v2223
      %v2225 = vpop.xlane.xlu0 %2224
      %v2226 = vrot.slane %v2225, 4
      %v2227 = vadd.f32 %v2225, %v2226
      %v2228 = vrot.slane %v2227, 2
      %v2229 = vadd.f32 %v2227, %v2228
      %v2230 = vrot.slane %v2229, 1
      %v2231 = vadd.f32 %v2229, %v2230
      %s2232 = vtos %v2231
      %v2233 = vstv %s2232
      %v2234 = vadd.f32 %v2122, %v2233
      %2235 = vst.msk [vmem:[#allocation5] sm:$0x1] %vm2055, %v2234
      %2236 = vst.msk [vmem:[#allocation4] sm:$0x1] %vm2055, %v2115
      %p2237 = scmp.eq.s32.totalorder %s30, 1
      // Predicated region
      $region61: #{mine_forward.1} parent=55 // pred_check
        %p2238 = pneg %p2237
      $region62: #{mine_forward.1} parent=55 // pred_check_branch
        %2240 = sbr.rel (%p2238) target = $region64
      $region63: #{mine_forward.1} parent=55 // pred_region
        %v2241 = vld [vmem:[#allocation3] sm:$0x1]
        %v2243 = vlaneseq
        %v2244 = vshrl.u32 %v2243, 7
        %v2245 = vsub.s32 0, %v2244
        %v2246 = vrot.slane %v2241, %v2245
        %2247 = vset.pattern.permute.xlu0 0
        %2248 = vperm.xlu0 %2247, %v2246
        %v2249 = vpop.permute.xlu0 %2248
        %2251 = vst [vmem:[%s601] sm:$0xff] %v2249
        %v2252 = vld [vmem:[#allocation4] sm:$0x1]
        %v2254 = vlaneseq
        %v2255 = vshrl.u32 %v2254, 7
        %v2256 = vsub.s32 0, %v2255
        %v2257 = vrot.slane %v2252, %v2256
        %2258 = vset.pattern.permute.xlu0 0
        %2259 = vperm.xlu0 %2258, %v2257
        %v2260 = vpop.permute.xlu0 %2259
        %2262 = vst [vmem:[%s605] sm:$0xff] %v2260
        %v2263 = vld [vmem:[#allocation5] sm:$0x1]
        %v2265 = vlaneseq
        %v2266 = vshrl.u32 %v2265, 7
        %v2267 = vsub.s32 0, %v2266
        %v2268 = vrot.slane %v2263, %v2267
        %2269 = vset.pattern.permute.xlu0 0
        %2270 = vperm.xlu0 %2269, %v2268
        %v2271 = vpop.permute.xlu0 %2270
        %2273 = vst [vmem:[%s609] sm:$0xff] %v2271
      $region64: #{mine_forward.1} parent=55 // pred_fallthru
        _
      %p2274 = scmp.lt.s32.totalorder %s29, 1
      %s2275 = scalar_select %p2274, %s29, 1
      %s2276 = smul.addr %s2275, 8
      %s2277 = scalar_lea.vmem %s9, %s2276
      %p2278 = scmp.lt.s32.totalorder %s29, 1
      %s2279 = scalar_select %p2278, %s29, 1
      %s2280 = smul.addr %s2279, 8
      %s2281 = scalar_lea.vmem %s10, %s2280
      %p2282 = scmp.lt.s32.totalorder %s29, 1
      %s2283 = scalar_select %p2282, %s29, 1
      %s2284 = smul.addr %s2283, 8
      %s2285 = scalar_lea.vmem %s11, %s2284
      // Predicated region
      $region65: #{mine_forward.1} parent=55 // pred_check
        %p2286 = pneg %p283
      $region66: #{mine_forward.1} parent=55 // pred_check_branch
        %2288 = sbr.rel (%p2286) target = $region68
      $region67: #{mine_forward.1} parent=55 // pred_region
        _
      $region68: #{mine_forward.1} parent=55 // pred_fallthru
        _
      // Predicated region
      $region69: #{mine_forward.1} parent=55 // pred_check
        %p2289 = pneg %p309
      $region70: #{mine_forward.1} parent=55 // pred_check_branch
        %2291 = sbr.rel (%p2289) target = $region72
      $region71: #{mine_forward.1} parent=55 // pred_region
        _
      $region72: #{mine_forward.1} parent=55 // pred_fallthru
        _
      // Predicated region
      $region73: #{mine_forward.1} parent=55 // pred_check
        %p2292 = pneg %p335
      $region74: #{mine_forward.1} parent=55 // pred_check_branch
        %2294 = sbr.rel (%p2292) target = $region76
      $region75: #{mine_forward.1} parent=55 // pred_region
        _
      $region76: #{mine_forward.1} parent=55 // pred_fallthru
        _
    $region56: #{mine_forward.1} parent=5 // pred_fallthru
      _
    %p2295 = scmp.le.s32.totalorder 2, %s20
    // Predicated region
    $region77: #{mine_forward.1} parent=5 // pred_check
      %p2296 = pneg %p2295
    $region78: #{mine_forward.1} parent=5 // pred_check_branch
      %2298 = sbr.rel (%p2296) target = $region80
    $region79: #{mine_forward.1} parent=5 // pred_region
      %s2299 = ssub.s32 %s20, 2
      // Predicated region
      $region81: #{mine_forward.1} parent=79 // pred_check
        %p2300 = pneg %p289
      $region82: #{mine_forward.1} parent=79 // pred_check_branch
        %2302 = sbr.rel (%p2300) target = $region84
      $region83: #{mine_forward.1} parent=79 // pred_region
        %p2303 = scmp.lt.s32.totalorder %s31, 1
        %s2304 = scalar_select %p2303, %s31, 1
        %s2305 = smul.addr %s2304, 8
        %s2306 = scalar_lea.vmem %s9, %s2305
      $region84: #{mine_forward.1} parent=79 // pred_fallthru
        _
      // Predicated region
      $region85: #{mine_forward.1} parent=79 // pred_check
        %p2307 = pneg %p315
      $region86: #{mine_forward.1} parent=79 // pred_check_branch
        %2309 = sbr.rel (%p2307) target = $region88
      $region87: #{mine_forward.1} parent=79 // pred_region
        %p2310 = scmp.lt.s32.totalorder %s31, 1
        %s2311 = scalar_select %p2310, %s31, 1
        %s2312 = smul.addr %s2311, 8
        %s2313 = scalar_lea.vmem %s10, %s2312
      $region88: #{mine_forward.1} parent=79 // pred_fallthru
        _
      // Predicated region
      $region89: #{mine_forward.1} parent=79 // pred_check
        %p2314 = pneg %p341
      $region90: #{mine_forward.1} parent=79 // pred_check_branch
        %2316 = sbr.rel (%p2314) target = $region92
      $region91: #{mine_forward.1} parent=79 // pred_region
        %p2317 = scmp.lt.s32.totalorder %s31, 1
        %s2318 = scalar_select %p2317, %s31, 1
        %s2319 = smul.addr %s2318, 8
        %s2320 = scalar_lea.vmem %s11, %s2319
      $region92: #{mine_forward.1} parent=79 // pred_fallthru
        _
    $region80: #{mine_forward.1} parent=5 // pred_fallthru
      _
  $region6: #{mine_forward.1} parent=0 // loop_footer
    %s24 = sadd.s32 1, %s20
  $region7: #{mine_forward.1} parent=0 // loop_footer_branch
    %19 = sbr.rel target = $region3
  $region8: #{mine_forward.1} parent=0 // loop_exit
    _

</llo_original>
